<compile_context>
chip_gen: v7x
topology: tpu7x:2x2x1
jax: 0.10.0
libtpu: 0.0.40
codegen_flags: <defaults>
</compile_context>

<pallas_src>
import functools

import jax
import jax.numpy as jnp
import numpy as np
from jax.experimental import pallas as pl
from jax.experimental.pallas import tpu as pltpu

LANE = 128
WINDOW = 2048           # transform_window_size
STEP = 256              # transform_step_size
N_COEFF = WINDOW // 2   # 1024 coefficients kept (n_coeffs - 1, Nyquist dropped)


# -----------------------------------------------------------------------------
# Windowed DFT basis (Hann window and 'ortho' rFFT scaling folded in).
# TODO(synk): the `stft` helper is not included in the spec; the standard
# Hann-windowed, ortho-normalized rFFT magnitude used with stft_transform in
# this codebase is assumed.
# -----------------------------------------------------------------------------
@functools.lru_cache(maxsize=None)
def _dft_basis(window: int, n_coeff: int):
    n = np.arange(window)
    k = np.arange(n_coeff)
    ang = 2.0 * np.pi * (np.outer(n, k) % window) / window
    win = 0.5 - 0.5 * np.cos(2.0 * np.pi * n / window)   # periodic Hann
    scale = 1.0 / np.sqrt(window)                        # norm='ortho'
    cos_b = (np.cos(ang) * win[:, None] * scale).astype(np.float32)
    sin_b = (np.sin(ang) * win[:, None] * scale).astype(np.float32)
    return jnp.asarray(cos_b), jnp.asarray(sin_b)


# -----------------------------------------------------------------------------
# Kernel 1: windowed-DFT magnitude (frames @ cos/sin basis, then |.|).
# -----------------------------------------------------------------------------
def _stft_mag_kernel(fr_ref, c_ref, s_ref, o_ref, re_acc, im_acc):
    k = pl.program_id(1)

    @pl.when(k == 0)
    def _():
        re_acc[...] = jnp.zeros_like(re_acc)
        im_acc[...] = jnp.zeros_like(im_acc)

    fr = fr_ref[...].astype(jnp.float32)
    re_acc[...] += jnp.dot(fr, c_ref[...], preferred_element_type=jnp.float32)
    im_acc[...] += jnp.dot(fr, s_ref[...], preferred_element_type=jnp.float32)

    @pl.when(k == pl.num_programs(1) - 1)
    def _():
        o_ref[...] = jnp.sqrt(re_acc[...] * re_acc[...] +
                              im_acc[...] * im_acc[...]).astype(o_ref.dtype)


def _stft_mag(frames, cos_b, sin_b, *, tile_n=512, tile_k=512):
    m, window = frames.shape
    n_out = cos_b.shape[1]
    assert window % tile_k == 0 and n_out % tile_n == 0
    grid = (n_out // tile_n, window // tile_k)
    return pl.pallas_call(
        _stft_mag_kernel,
        out_shape=jax.ShapeDtypeStruct((m, n_out), jnp.float32),
        grid_spec=pltpu.PrefetchScalarGridSpec(
            num_scalar_prefetch=0,
            grid=grid,
            in_specs=[
                pl.BlockSpec((m, tile_k), lambda j, k: (0, k)),
                pl.BlockSpec((tile_k, tile_n), lambda j, k: (k, j)),
                pl.BlockSpec((tile_k, tile_n), lambda j, k: (k, j)),
            ],
            out_specs=pl.BlockSpec((m, tile_n), lambda j, k: (0, j)),
            scratch_shapes=[pltpu.VMEM((m, tile_n), jnp.float32),
                            pltpu.VMEM((m, tile_n), jnp.float32)],
        ),
        compiler_params=pltpu.CompilerParams(
            dimension_semantics=("parallel", "arbitrary")),
    )(frames, cos_b, sin_b)


def _frame_signal(x):
    b, c, t = x.shape
    xp = jnp.pad(x, ((0, 0), (0, 0), (0, STEP)))        # F.pad(x, (0, step))
    n_frames = (t + STEP - WINDOW) // STEP + 1
    idx = np.arange(n_frames)[:, None] * STEP + np.arange(WINDOW)[None, :]
    frames = xp[:, :, idx]                               # (b, c, n_frames, WINDOW)
    return frames.reshape(b * c * n_frames, WINDOW), n_frames


def stft_transform(x, *, use_pallas=True):
    b, c, _ = x.shape
    frames, n_frames = _frame_signal(x)
    cos_b, sin_b = _dft_basis(WINDOW, N_COEFF)
    if use_pallas:
        mags = _stft_mag(frames, cos_b, sin_b)
    else:
        re = jnp.dot(frames, cos_b, precision=jax.lax.Precision.HIGHEST)
        im = jnp.dot(frames, sin_b, precision=jax.lax.Precision.HIGHEST)
        mags = jnp.sqrt(re * re + im * im)
    spec = mags.reshape(b, c * n_frames, N_COEFF)
    spec = jnp.transpose(spec, (0, 2, 1)).reshape(b, -1)  # == permute(0,2,1).reshape
    return spec


# -----------------------------------------------------------------------------
# Kernel 2: streaming reduction over the flattened spectrograms.
# Outputs are (B, 128) lane-parallel partial sums kept resident in VMEM across
# the grid (accumulator pattern); the tiny final reduce happens in the wrapper.
# -----------------------------------------------------------------------------
def _spec_reduce_kernel(t_ref, r_ref, t2_ref, r2_ref, d1_ref, d2_ref):
    i = pl.program_id(0)

    @pl.when(i == 0)
    def _():
        t2_ref[...] = jnp.zeros_like(t2_ref)
        r2_ref[...] = jnp.zeros_like(r2_ref)
        d1_ref[...] = jnp.zeros_like(d1_ref)
        d2_ref[...] = jnp.zeros_like(d2_ref)

    t = t_ref[...].astype(jnp.float32)
    r = r_ref[...].astype(jnp.float32)
    folds = t.shape[1] // LANE

    t2 = t2_ref[...]
    r2 = r2_ref[...]
    d1 = d1_ref[...]
    d2 = d2_ref[...]
    for j in range(folds):  # static unroll: pure VPU adds, no per-step XLU reduce
        tj = t[:, j * LANE:(j + 1) * LANE]
        rj = r[:, j * LANE:(j + 1) * LANE]
        dj = tj - rj
        t2 += tj * tj
        r2 += rj * rj
        d1 += dj
        d2 += dj * dj
    t2_ref[...] = t2
    r2_ref[...] = r2
    d1_ref[...] = d1
    d2_ref[...] = d2


def _pick_col_tile(f):
    for cand in (4096, 2048, 1024, 512, 256, 128):
        if f % cand == 0:
            return cand
    return f


def _spec_reduce(t_spec, r_spec):
    b, f = t_spec.shape
    tile_f = _pick_col_tile(f)
    out_shape = tuple(jax.ShapeDtypeStruct((b, LANE), jnp.float32) for _ in range(4))
    out_specs = tuple(pl.BlockSpec((b, LANE), lambda i: (0, 0)) for _ in range(4))
    return pl.pallas_call(
        _spec_reduce_kernel,
        out_shape=out_shape,
        grid_spec=pltpu.PrefetchScalarGridSpec(
            num_scalar_prefetch=0,
            grid=(f // tile_f,),
            in_specs=[pl.BlockSpec((b, tile_f), lambda i: (0, i)),
                      pl.BlockSpec((b, tile_f), lambda i: (0, i))],
            out_specs=out_specs,
        ),
        compiler_params=pltpu.CompilerParams(dimension_semantics=("arbitrary",)),
    )(t_spec, r_spec)


# -----------------------------------------------------------------------------
# Kernel 3: fused covariance-difference loss on the selected columns.
# TODO(synk): `covariance` is not included in the spec; batch-centered feature
# covariance (x_c^T x_c / B) is assumed.
# -----------------------------------------------------------------------------
def _cov_loss_kernel(n_ref, r_ref, o_ref):
    n = n_ref[...].astype(jnp.float32)
    r = r_ref[...].astype(jnp.float32)
    b = n.shape[0]
    n_c = n - jnp.mean(n, axis=0, keepdims=True)
    r_c = r - jnp.mean(r, axis=0, keepdims=True)
    dims = (((0,), (0,)), ((), ()))  # contract over the batch dim (lhs-transposed)
    cov_n = jax.lax.dot_general(n_c, n_c, dims, preferred_element_type=jnp.float32) / b
    cov_r = jax.lax.dot_general(r_c, r_c, dims, preferred_element_type=jnp.float32) / b
    o_ref[0, 0] = jnp.sum(jnp.abs(cov_n - cov_r))


def _cov_loss(noise_sel, res_sel):
    b, p = noise_sel.shape
    assert p % LANE == 0, "n_elements must be a multiple of 128 for the lane axis"
    return pl.pallas_call(
        _cov_loss_kernel,
        out_shape=jax.ShapeDtypeStruct((1, 1), jnp.float32),
        grid_spec=pltpu.PrefetchScalarGridSpec(
            num_scalar_prefetch=0,
            grid=(1,),
            in_specs=[pl.BlockSpec((b, p), lambda i: (0, 0)),
                      pl.BlockSpec((b, p), lambda i: (0, 0))],
            out_specs=pl.BlockSpec((1, 1), lambda i: (0, 0)),
        ),
        compiler_params=pltpu.CompilerParams(dimension_semantics=("arbitrary",)),
    )(noise_sel, res_sel)[0, 0]


# -----------------------------------------------------------------------------
# HingeyTypeLoss.forward
# -----------------------------------------------------------------------------
def hingey_type_loss(target, recon, key, *, n_elements=256, use_pallas=True):
    b, _, _ = target.shape
    t_spec = stft_transform(target, use_pallas=use_pallas)
    r_spec = stft_transform(recon, use_pallas=use_pallas)
    f = t_spec.shape[1]

    if use_pallas:
        t2, r2, d1, d2 = _spec_reduce(t_spec, r_spec)
        t_sq = jnp.sum(t2, axis=1)
        r_sq = jnp.sum(r2, axis=1)
        res_sum = jnp.sum(d1)
        res_sqsum = jnp.sum(d2)
    else:
        res = t_spec - r_spec
        t_sq = jnp.sum(t_spec * t_spec, axis=1)
        r_sq = jnp.sum(r_spec * r_spec, axis=1)
        res_sum = jnp.sum(res)
        res_sqsum = jnp.sum(res * res)

    target_norm = jnp.sqrt(t_sq)
    recon_norm = jnp.sqrt(r_sq)
    norm_loss = jnp.sum(jnp.maximum(recon_norm - target_norm, 0.0))

    n_total = b * f
    res_mean = res_sum / n_total
    res_var = jnp.maximum(res_sqsum - res_sum * res_sum / n_total, 0.0) / (n_total - 1)
    res_std = jnp.sqrt(res_var)  # torch Tensor.std(): unbiased

    k_perm, k_noise = jax.random.split(key)
    idx = jax.random.permutation(k_perm, f)[:n_elements]
    # TODO(synk): torch draws noise for the full spectrogram then indexes it;
    # sampling only the selected iid columns is distributionally identical.
    z = jax.random.normal(k_noise, (b, n_elements), dtype=jnp.float32)
    noise_sel = res_mean + res_std * z

    t_sel = jnp.take(t_spec, idx, axis=1)
    r_sel = jnp.take(r_spec, idx, axis=1)
    res_sel = t_sel - r_sel

    if use_pallas:
        cov_loss = _cov_loss(noise_sel, res_sel)
    else:
        def covariance(x):
            xc = x - jnp.mean(x, axis=0, keepdims=True)
            return jnp.dot(xc.T, xc, precision=jax.lax.Precision.HIGHEST) / x.shape[0]
        cov_loss = jnp.sum(jnp.abs(covariance(noise_sel) - covariance(res_sel)))

    return norm_loss + cov_loss


if __name__ == "__main__":
    key = jax.random.PRNGKey(0)
    k_t, k_r, k_loss = jax.random.split(key, 3)
    batch, channels, time = 2, 1, 4096  # smallest sensible audio shape (>= window)
    target = jax.random.normal(k_t, (batch, channels, time), dtype=jnp.float32)
    recon = 1.5 * jax.random.normal(k_r, (batch, channels, time), dtype=jnp.float32)

    loss = hingey_type_loss(target, recon, k_loss)
    jax.block_until_ready(loss)

    # Pure-JAX reference with identical randomness (same key) for sanity.
    ref = hingey_type_loss(target, recon, k_loss, use_pallas=False)
    jax.block_until_ready(ref)
    assert jnp.allclose(loss, ref, rtol=2e-2, atol=1e-2), (float(loss), float(ref))

    print("KERNEL_OK")
</pallas_src>

<mosaic_0001>
module attributes {stable_mosaic.version = 11 : i64} {
  func.func @_stft_mag_kernel(%arg0: i32, %arg1: i32, %arg2: memref<20x512xf32, #tpu.memory_space<vmem>>, %arg3: memref<512x512xf32, #tpu.memory_space<vmem>>, %arg4: memref<512x512xf32, #tpu.memory_space<vmem>>, %arg5: memref<20x512xf32, #tpu.memory_space<vmem>>, %arg6: memref<20x512xf32, #tpu.memory_space<vmem>>, %arg7: memref<20x512xf32, #tpu.memory_space<vmem>>) attributes {dimension_semantics = [#tpu.dimension_semantics<parallel>, #tpu.dimension_semantics<arbitrary>], iteration_bounds = array<i64: 2, 4>, scalar_prefetch = 0 : i64, scratch_operands = 2 : i64, tpu.core_type = #tpu.core_type<tc>, window_params = [{transform_indices = @transform_0, window_bounds = array<i64: 20, 512>}, {transform_indices = @transform_1, window_bounds = array<i64: 512, 512>}, {transform_indices = @transform_2, window_bounds = array<i64: 512, 512>}, {transform_indices = @transform_3, window_bounds = array<i64: 20, 512>}]} {
    %c0_i32 = arith.constant 0 : i32
    %0 = arith.cmpi eq, %arg1, %c0_i32 : i32
    %1 = arith.extui %0 : i1 to i32
    %c0_i32_0 = arith.constant 0 : i32
    %2 = arith.cmpi ne, %1, %c0_i32_0 : i32
    scf.if %2 {
      %cst_16 = arith.constant 0.000000e+00 : f32
      %17 = vector.broadcast %cst_16 : f32 to vector<20x512xf32>
      %c0_17 = arith.constant 0 : index
      %c0_18 = arith.constant 0 : index
      %18 = vector.load %arg6[%c0_17, %c0_18] : memref<20x512xf32, #tpu.memory_space<vmem>>, vector<20x512xf32>
      tpu.vector_store %arg6[%c0_17, %c0_18], %17 {strides = array<i32>} : memref<20x512xf32, #tpu.memory_space<vmem>>, vector<20x512xf32>,
      %cst_19 = arith.constant 0.000000e+00 : f32
      %19 = vector.broadcast %cst_19 : f32 to vector<20x512xf32>
      %c0_20 = arith.constant 0 : index
      %c0_21 = arith.constant 0 : index
      %20 = vector.load %arg7[%c0_20, %c0_21] : memref<20x512xf32, #tpu.memory_space<vmem>>, vector<20x512xf32>
      tpu.vector_store %arg7[%c0_20, %c0_21], %19 {strides = array<i32>} : memref<20x512xf32, #tpu.memory_space<vmem>>, vector<20x512xf32>,
    } else {
    }
    %c0 = arith.constant 0 : index
    %c0_1 = arith.constant 0 : index
    %3 = vector.load %arg2[%c0, %c0_1] : memref<20x512xf32, #tpu.memory_space<vmem>>, vector<20x512xf32>
    %c0_2 = arith.constant 0 : index
    %c0_3 = arith.constant 0 : index
    %4 = vector.load %arg6[%c0_2, %c0_3] : memref<20x512xf32, #tpu.memory_space<vmem>>, vector<20x512xf32>
    %c0_4 = arith.constant 0 : index
    %c0_5 = arith.constant 0 : index
    %5 = vector.load %arg3[%c0_4, %c0_5] : memref<512x512xf32, #tpu.memory_space<vmem>>, vector<512x512xf32>
    %cst = arith.constant dense<0.000000e+00> : vector<20x512xf32>
    %6 = tpu.matmul %3, %5, %cst {dimension_numbers = #tpu.dot_dimension_numbers<[1], [0], [0], [1], [0, 0, 1, 1], [], []>} : vector<20x512xf32>, vector<512x512xf32>, vector<20x512xf32> -> vector<20x512xf32>
    %7 = arith.addf %4, %6 : vector<20x512xf32>
    %c0_6 = arith.constant 0 : index
    %c0_7 = arith.constant 0 : index
    %8 = vector.load %arg6[%c0_6, %c0_7] : memref<20x512xf32, #tpu.memory_space<vmem>>, vector<20x512xf32>
    tpu.vector_store %arg6[%c0_6, %c0_7], %7 {strides = array<i32>} : memref<20x512xf32, #tpu.memory_space<vmem>>, vector<20x512xf32>,
    %c0_8 = arith.constant 0 : index
    %c0_9 = arith.constant 0 : index
    %9 = vector.load %arg7[%c0_8, %c0_9] : memref<20x512xf32, #tpu.memory_space<vmem>>, vector<20x512xf32>
    %c0_10 = arith.constant 0 : index
    %c0_11 = arith.constant 0 : index
    %10 = vector.load %arg4[%c0_10, %c0_11] : memref<512x512xf32, #tpu.memory_space<vmem>>, vector<512x512xf32>
    %cst_12 = arith.constant dense<0.000000e+00> : vector<20x512xf32>
    %11 = tpu.matmul %3, %10, %cst_12 {dimension_numbers = #tpu.dot_dimension_numbers<[1], [0], [0], [1], [0, 0, 1, 1], [], []>} : vector<20x512xf32>, vector<512x512xf32>, vector<20x512xf32> -> vector<20x512xf32>
    %12 = arith.addf %9, %11 : vector<20x512xf32>
    %c0_13 = arith.constant 0 : index
    %c0_14 = arith.constant 0 : index
    %13 = vector.load %arg7[%c0_13, %c0_14] : memref<20x512xf32, #tpu.memory_space<vmem>>, vector<20x512xf32>
    tpu.vector_store %arg7[%c0_13, %c0_14], %12 {strides = array<i32>} : memref<20x512xf32, #tpu.memory_space<vmem>>, vector<20x512xf32>,
    %c3_i32 = arith.constant 3 : i32
    %14 = arith.cmpi eq, %arg1, %c3_i32 : i32
    %15 = arith.extui %14 : i1 to i32
    %c0_i32_15 = arith.constant 0 : i32
    %16 = arith.cmpi ne, %15, %c0_i32_15 : i32
    scf.if %16 {
      %c0_16 = arith.constant 0 : index
      %c0_17 = arith.constant 0 : index
      %17 = vector.load %arg6[%c0_16, %c0_17] : memref<20x512xf32, #tpu.memory_space<vmem>>, vector<20x512xf32>
      %c0_18 = arith.constant 0 : index
      %c0_19 = arith.constant 0 : index
      %18 = vector.load %arg6[%c0_18, %c0_19] : memref<20x512xf32, #tpu.memory_space<vmem>>, vector<20x512xf32>
      %19 = arith.mulf %17, %18 : vector<20x512xf32>
      %c0_20 = arith.constant 0 : index
      %c0_21 = arith.constant 0 : index
      %20 = vector.load %arg7[%c0_20, %c0_21] : memref<20x512xf32, #tpu.memory_space<vmem>>, vector<20x512xf32>
      %c0_22 = arith.constant 0 : index
      %c0_23 = arith.constant 0 : index
      %21 = vector.load %arg7[%c0_22, %c0_23] : memref<20x512xf32, #tpu.memory_space<vmem>>, vector<20x512xf32>
      %22 = arith.mulf %20, %21 : vector<20x512xf32>
      %23 = arith.addf %19, %22 : vector<20x512xf32>
      %24 = math.sqrt %23 : vector<20x512xf32>
      %c0_24 = arith.constant 0 : index
      %c0_25 = arith.constant 0 : index
      %25 = vector.load %arg5[%c0_24, %c0_25] : memref<20x512xf32, #tpu.memory_space<vmem>>, vector<20x512xf32>
      tpu.vector_store %arg5[%c0_24, %c0_25], %24 {strides = array<i32>} : memref<20x512xf32, #tpu.memory_space<vmem>>, vector<20x512xf32>,
    } else {
    }
    return
  }
  func.func @transform_0(%arg0: i32, %arg1: i32) -> (i32, i32) {
    %c0_i32 = arith.constant 0 : i32
    %c0_i32_0 = arith.constant 0 : i32
    return %c0_i32, %arg1 : i32, i32
  }
  func.func @transform_1(%arg0: i32, %arg1: i32) -> (i32, i32) {
    %c0_i32 = arith.constant 0 : i32
    return %arg1, %arg0 : i32, i32
  }
  func.func @transform_2(%arg0: i32, %arg1: i32) -> (i32, i32) {
    %c0_i32 = arith.constant 0 : i32
    return %arg1, %arg0 : i32, i32
  }
  func.func @transform_3(%arg0: i32, %arg1: i32) -> (i32, i32) {
    %c0_i32 = arith.constant 0 : i32
    %c0_i32_0 = arith.constant 0 : i32
    return %c0_i32, %arg0 : i32, i32
  }
}

</mosaic_0001>

<llo_original>
// kernel: tpu_custom_call.1
$region0: #{tpu_custom_call.1}
  #allocation0 [shape = 'u32[]', space=smem, size = 0x4, offset = 0x4, fixed_abs, tag = 'smem constant byte address 0x4 - core index']
  #allocation1 [shape = 'u32[144,128]{1,0:T(1,128)}', space=vmem, size = 0x12000, scoped, tag = 'internal scratch']
  #allocation2 [shape = 'f32[20,512]{1,0:T(8,128)}', space=vmem, size = 0xc000, scoped, tag = 'scratch operand']
  #allocation3 [shape = 'f32[20,512]{1,0:T(8,128)}', space=vmem, size = 0xc000, scoped, tag = 'scratch operand']
  %s0 = inlined_call_operand.hbm [shape: f32[20,2048], index: 0, kind: input, shape index: {}]
  %s1 = inlined_call_operand.hbm [shape: f32[2048,1024], index: 1, kind: input, shape index: {}]
  %s2 = inlined_call_operand.hbm [shape: f32[2048,1024], index: 2, kind: input, shape index: {}]
  %s3 = inlined_call_operand.hbm [shape: f32[20,1024], index: 3, kind: output, shape index: {}]
  %s4 = sld [smem:[#allocation0]]
  $region65: #{tpu_custom_call.1} parent=0
    _
  %s6 = ssub.s32 1, %s4
  %s7 = scalar_select 0, %s6, %s4
  $region1: #{tpu_custom_call.1} parent=0
    #allocation4 [shape = 'u8[98304]{0}', space=vmem, size = 0x18000, scoped, tag = 'input window, operand 0']
    #allocation5 [shape = 's32[2]{0}', space=sflag, size = 0x8, scoped, tag = 'scoped memory for tpu_custom_call.1']
    #allocation6 [shape = 's32[2]{0}', space=sflag, size = 0x8, scoped, tag = 'scoped memory for tpu_custom_call.1']
    #allocation7 [shape = 'u8[2097152]{0}', space=vmem, size = 0x200000, scoped, tag = 'input window, operand 1']
    #allocation8 [shape = 's32[2]{0}', space=sflag, size = 0x8, scoped, tag = 'scoped memory for tpu_custom_call.1']
    #allocation9 [shape = 'u8[2097152]{0}', space=vmem, size = 0x200000, scoped, tag = 'input window, operand 2']
    #allocation10 [shape = 'u8[98304]{0}', space=vmem, size = 0x18000, scoped, tag = 'output window, operand 0']
    %8 = vsyncpa [#allocation5], 0
    %s9 = scalar_lea.sflag [#allocation5], 1
    %10 = vsyncpa %s9, 0
    %11 = vsyncpa [#allocation8], 0
    %s12 = scalar_lea.sflag [#allocation8], 1
    %13 = vsyncpa %s12, 0
    %14 = vsyncpa [#allocation6], 0
    %s15 = scalar_lea.sflag [#allocation6], 1
    %16 = vsyncpa %s15, 0
    loop: start=0, step=1, limit=10
    $region2: #{tpu_custom_call.1} parent=1 // loop_pre_header
      _
    $region3: #{tpu_custom_call.1} parent=1 // loop_header
      %s18 = sphi 0, %s22
      %p19 = scmp.ge.s32.totalorder %s18, 10
      %s25 = sphi 0, %s37
      %s26 = sphi 0, %s33
      %s27 = sphi 0, %s25
      %s28 = sphi 0, %s26
      %s29 = sphi 0, %s27
      %s30 = sphi 0, %s28
      %s40 = sphi 0, %s42
      %s43 = sphi 0, %s40
      %s44 = sphi 0, %s43
      %s60 = sphi 0, %s44
      %s68 = sphi 0, %s70
      %s71 = sphi 0, %s68
      %s72 = sphi 0, %s71
      %s88 = sphi 0, %s72
      %s96 = sphi 0, %s98
      %s99 = sphi 0, %s96
      %s100 = sphi 0, %s99
      %s116 = sphi 0, %s100
      %s122 = sphi 0, %s124
      %s125 = sphi 0, %s122
      %s126 = sphi 0, %s125
      %s142 = sphi 0, %s126
    $region4: #{tpu_custom_call.1} parent=1 // loop_header_branch
      %21 = sbr.rel (%p19) target = $region8
    $region5: #{tpu_custom_call.1} parent=1 // loop_body
      %s23 = ssub.s32 %s18, 1
      %s24 = ssub.s32 %s18, 2
      %s31 = sadd.s32 1, %s26
      %p32 = scmp.ge.s32.totalorder %s31, 4
      %s33 = scalar_select %p32, 0, %s31
      %s34 = sadd.s32 1, %s25
      %s35 = scalar_select %p32, %s34, %s25
      %p36 = scmp.ge.s32.totalorder %s35, 2
      %s37 = scalar_select %p36, 0, %s35
      %s38 = ssub.s32 %s26, %s33
      %p39 = scmp.eq.s32.totalorder %s38, 0
      %s41 = sadd.s32 %s40, 1
      %s42 = scalar_select %p39, %s40, %s41
      %p45 = pneg %p39
      %p46 = scmp.eq.s32.totalorder %s18, 7
      %p47 = por %p45, %p46
      %p48 = scmp.ne.s32.totalorder %s40, %s43
      %p49 = scmp.eq.s32.totalorder %s18, 0
      %p50 = por %p48, %p49
      %p51 = scmp.ne.s32.totalorder %s40, %s43
      %p52 = scmp.eq.s32.totalorder %s23, 7
      %p53 = por %p51, %p52
      %p54 = scmp.ne.s32.totalorder %s43, %s44
      %p55 = scmp.eq.s32.totalorder %s23, 0
      %p56 = por %p54, %p55
      %p57 = scmp.ne.s32.totalorder %s43, %s44
      %p58 = scmp.eq.s32.totalorder %s24, 7
      %p59 = por %p57, %p58
      %p61 = scmp.ne.s32.totalorder %s44, %s60
      %p62 = scmp.eq.s32.totalorder %s24, 0
      %p63 = por %p61, %p62
      %s64 = ssub.s32 %s26, %s33
      %s65 = ssub.s32 %s25, %s37
      %s66 = sor.u32 %s64, %s65
      %p67 = scmp.eq.s32.totalorder %s66, 0
      %s69 = sadd.s32 %s68, 1
      %s70 = scalar_select %p67, %s68, %s69
      %p73 = pneg %p67
      %p74 = scmp.eq.s32.totalorder %s18, 7
      %p75 = por %p73, %p74
      %p76 = scmp.ne.s32.totalorder %s68, %s71
      %p77 = scmp.eq.s32.totalorder %s18, 0
      %p78 = por %p76, %p77
      %p79 = scmp.ne.s32.totalorder %s68, %s71
      %p80 = scmp.eq.s32.totalorder %s23, 7
      %p81 = por %p79, %p80
      %p82 = scmp.ne.s32.totalorder %s71, %s72
      %p83 = scmp.eq.s32.totalorder %s23, 0
      %p84 = por %p82, %p83
      %p85 = scmp.ne.s32.totalorder %s71, %s72
      %p86 = scmp.eq.s32.totalorder %s24, 7
      %p87 = por %p85, %p86
      %p89 = scmp.ne.s32.totalorder %s72, %s88
      %p90 = scmp.eq.s32.totalorder %s24, 0
      %p91 = por %p89, %p90
      %s92 = ssub.s32 %s26, %s33
      %s93 = ssub.s32 %s25, %s37
      %s94 = sor.u32 %s92, %s93
      %p95 = scmp.eq.s32.totalorder %s94, 0
      %s97 = sadd.s32 %s96, 1
      %s98 = scalar_select %p95, %s96, %s97
      %p101 = pneg %p95
      %p102 = scmp.eq.s32.totalorder %s18, 7
      %p103 = por %p101, %p102
      %p104 = scmp.ne.s32.totalorder %s96, %s99
      %p105 = scmp.eq.s32.totalorder %s18, 0
      %p106 = por %p104, %p105
      %p107 = scmp.ne.s32.totalorder %s96, %s99
      %p108 = scmp.eq.s32.totalorder %s23, 7
      %p109 = por %p107, %p108
      %p110 = scmp.ne.s32.totalorder %s99, %s100
      %p111 = scmp.eq.s32.totalorder %s23, 0
      %p112 = por %p110, %p111
      %p113 = scmp.ne.s32.totalorder %s99, %s100
      %p114 = scmp.eq.s32.totalorder %s24, 7
      %p115 = por %p113, %p114
      %p117 = scmp.ne.s32.totalorder %s100, %s116
      %p118 = scmp.eq.s32.totalorder %s24, 0
      %p119 = por %p117, %p118
      %s120 = ssub.s32 %s25, %s37
      %p121 = scmp.eq.s32.totalorder %s120, 0
      %s123 = sadd.s32 %s122, 1
      %s124 = scalar_select %p121, %s122, %s123
      %p127 = pneg %p121
      %p128 = scmp.eq.s32.totalorder %s18, 7
      %p129 = por %p127, %p128
      %p130 = scmp.ne.s32.totalorder %s122, %s125
      %p131 = scmp.eq.s32.totalorder %s18, 0
      %p132 = por %p130, %p131
      %p133 = scmp.ne.s32.totalorder %s122, %s125
      %p134 = scmp.eq.s32.totalorder %s23, 7
      %p135 = por %p133, %p134
      %p136 = scmp.ne.s32.totalorder %s125, %s126
      %p137 = scmp.eq.s32.totalorder %s23, 0
      %p138 = por %p136, %p137
      %p139 = scmp.ne.s32.totalorder %s125, %s126
      %p140 = scmp.eq.s32.totalorder %s24, 7
      %p141 = por %p139, %p140
      %p143 = scmp.ne.s32.totalorder %s126, %s142
      %p144 = scmp.eq.s32.totalorder %s24, 0
      %p145 = por %p143, %p144
      %p146 = scmp.le.s32.totalorder 1, %s18
      %p147 = scmp.lt.s32.totalorder %s18, 9
      %p148 = pnand %p146, %p147
      %p149 = pneg %p148
      // Predicated region
      $region9: #{tpu_custom_call.1} parent=5 // pred_check
        _
      $region10: #{tpu_custom_call.1} parent=5 // pred_check_branch
        %151 = sbr.rel (%p148) target = $region12
      $region11: #{tpu_custom_call.1} parent=5 // pred_region
        %s152 = ssub.s32 %s18, 1
      $region12: #{tpu_custom_call.1} parent=5 // pred_fallthru
        _
      %p153 = scmp.lt.s32.totalorder %s18, 8
      // Predicated region
      $region13: #{tpu_custom_call.1} parent=5 // pred_check
        %p154 = pneg %p153
      $region14: #{tpu_custom_call.1} parent=5 // pred_check_branch
        %156 = sbr.rel (%p154) target = $region16
      $region15: #{tpu_custom_call.1} parent=5 // pred_region
        // Predicated region
        $region17: #{tpu_custom_call.1} parent=15 // pred_check
          %p157 = pneg %p50
        $region18: #{tpu_custom_call.1} parent=15 // pred_check_branch
          %159 = sbr.rel (%p157) target = $region20
        $region19: #{tpu_custom_call.1} parent=15 // pred_region
          %s160 = sand.u32 %s40, 1
          %s161 = scalar_lea.sflag [#allocation5], %s160
          %s162 = sand.u32 %s40, 1
          %s163 = smul.addr %s162, 96
          %s164 = scalar_lea.vmem [#allocation4], %s163
          %s165 = smul.u32 4, %s26
          %s167 = ssub.s32 1536, 1536
          %168 = vsyncadd %s161, %s167
          %s169 = smul.addr %s165, 128
          %s170 = scalar_lea.hbm %s0, %s169
          %s171 = sshll.u32 %s164, 4
          %s172 = int_to_ptr.vmem [resolvable:$true] %s171
          %177 = dma.hbm_to_vmem [thread:$0]  %s170, 1536, %s172, %s161, 2048, 512, 32
        $region20: #{tpu_custom_call.1} parent=15 // pred_fallthru
          _
        // Predicated region
        $region21: #{tpu_custom_call.1} parent=15 // pred_check
          %p178 = pneg %p78
        $region22: #{tpu_custom_call.1} parent=15 // pred_check_branch
          %180 = sbr.rel (%p178) target = $region24
        $region23: #{tpu_custom_call.1} parent=15 // pred_region
          %s181 = sand.u32 %s18, 1
          %s182 = scalar_lea.sflag [#allocation8], %s181
          %s183 = sand.u32 %s68, 1
          %s184 = smul.addr %s183, 2048
          %s185 = scalar_lea.vmem [#allocation7], %s184
          %s186 = smul.u32 64, %s26
          %s187 = smul.u32 4, %s25
          %s189 = ssub.s32 32768, 32768
          %190 = vsyncadd %s182, %s189
          %s191 = smul.addr %s186, 8
          %s192 = sadd.s32 %s187, %s191
          %s193 = smul.addr %s192, 128
          %s194 = scalar_lea.hbm %s1, %s193
          %s195 = sshll.u32 %s185, 4
          %s196 = int_to_ptr.vmem [resolvable:$true] %s195
          %201 = dma.hbm_to_vmem [thread:$0]  %s194, 32768, %s196, %s182, 1024, 512, 32
        $region24: #{tpu_custom_call.1} parent=15 // pred_fallthru
          _
        // Predicated region
        $region25: #{tpu_custom_call.1} parent=15 // pred_check
          %p202 = pneg %p106
        $region26: #{tpu_custom_call.1} parent=15 // pred_check_branch
          %204 = sbr.rel (%p202) target = $region28
        $region27: #{tpu_custom_call.1} parent=15 // pred_region
          %s205 = sand.u32 %s18, 1
          %s206 = scalar_lea.sflag [#allocation8], %s205
          %s207 = sand.u32 %s96, 1
          %s208 = smul.addr %s207, 2048
          %s209 = scalar_lea.vmem [#allocation9], %s208
          %s210 = smul.u32 64, %s26
          %s211 = smul.u32 4, %s25
          %s213 = ssub.s32 32768, 32768
          %214 = vsyncadd %s206, %s213
          %s215 = smul.addr %s210, 8
          %s216 = sadd.s32 %s211, %s215
          %s217 = smul.addr %s216, 128
          %s218 = scalar_lea.hbm %s2, %s217
          %s219 = sshll.u32 %s209, 4
          %s220 = int_to_ptr.vmem [resolvable:$true] %s219
          %225 = dma.hbm_to_vmem [thread:$0]  %s218, 32768, %s220, %s206, 1024, 512, 32
        $region28: #{tpu_custom_call.1} parent=15 // pred_fallthru
          _
      $region16: #{tpu_custom_call.1} parent=5 // pred_fallthru
        _
      %p226 = scmp.le.s32.totalorder 1, %s18
      %p227 = scmp.lt.s32.totalorder %s18, 9
      %p228 = pnand %p226, %p227
      %p229 = pneg %p228
      // Predicated region
      $region29: #{tpu_custom_call.1} parent=5 // pred_check
        _
      $region30: #{tpu_custom_call.1} parent=5 // pred_check_branch
        %231 = sbr.rel (%p228) target = $region32
      $region31: #{tpu_custom_call.1} parent=5 // pred_region
        %s232 = ssub.s32 %s18, 1
        %s233 = sand.u32 %s43, 1
        %s234 = scalar_lea.sflag [#allocation5], %s233
        %s235 = sand.u32 %s43, 1
        %s236 = smul.addr %s235, 96
        %s237 = scalar_lea.vmem [#allocation4], %s236
        // Predicated region
        $region33: #{tpu_custom_call.1} parent=31 // pred_check
          %p238 = pneg %p56
        $region34: #{tpu_custom_call.1} parent=31 // pred_check_branch
          %240 = sbr.rel (%p238) target = $region36
        $region35: #{tpu_custom_call.1} parent=31 // pred_region
          %241 = dma.done %s234, 1536
        $region36: #{tpu_custom_call.1} parent=31 // pred_fallthru
          _
        %s242 = sand.u32 %s23, 1
        %s243 = scalar_lea.sflag [#allocation8], %s242
        %s244 = sand.u32 %s71, 1
        %s245 = smul.addr %s244, 2048
        %s246 = scalar_lea.vmem [#allocation7], %s245
        // Predicated region
        $region37: #{tpu_custom_call.1} parent=31 // pred_check
          %p247 = pneg %p84
        $region38: #{tpu_custom_call.1} parent=31 // pred_check_branch
          %249 = sbr.rel (%p247) target = $region40
        $region39: #{tpu_custom_call.1} parent=31 // pred_region
          %250 = dma.done %s243, 32768
        $region40: #{tpu_custom_call.1} parent=31 // pred_fallthru
          _
        %s251 = sand.u32 %s23, 1
        %s252 = scalar_lea.sflag [#allocation8], %s251
        %s253 = sand.u32 %s99, 1
        %s254 = smul.addr %s253, 2048
        %s255 = scalar_lea.vmem [#allocation9], %s254
        // Predicated region
        $region41: #{tpu_custom_call.1} parent=31 // pred_check
          %p256 = pneg %p112
        $region42: #{tpu_custom_call.1} parent=31 // pred_check_branch
          %258 = sbr.rel (%p256) target = $region44
        $region43: #{tpu_custom_call.1} parent=31 // pred_region
          %259 = dma.done %s252, 32768
        $region44: #{tpu_custom_call.1} parent=31 // pred_fallthru
          _
        %s260 = sand.u32 %s43, 1
        %s261 = scalar_lea.sflag [#allocation5], %s260
        %s262 = sand.u32 %s43, 1
        %s263 = smul.addr %s262, 96
        %s264 = scalar_lea.vmem [#allocation4], %s263
        %p265 = pneg %p56
        %p266 = pneg %p53
        %s267 = sand.u32 %s23, 1
        %s268 = scalar_lea.sflag [#allocation8], %s267
        %s269 = sand.u32 %s71, 1
        %s270 = smul.addr %s269, 2048
        %s271 = scalar_lea.vmem [#allocation7], %s270
        %p272 = pneg %p84
        %p273 = pneg %p81
        %s274 = sand.u32 %s23, 1
        %s275 = scalar_lea.sflag [#allocation8], %s274
        %s276 = sand.u32 %s99, 1
        %s277 = smul.addr %s276, 2048
        %s278 = scalar_lea.vmem [#allocation9], %s277
        %p279 = pneg %p112
        %p280 = pneg %p109
        %p281 = pneg %p138
        %p282 = pneg %p135
        %s283 = sand.u32 %s125, 1
        %s284 = scalar_lea.sflag [#allocation6], %s283
        %s285 = sand.u32 %s125, 1
        %s286 = smul.addr %s285, 96
        %s287 = scalar_lea.vmem [#allocation10], %s286
        %s288 = smul.u32 4, %s28
        %s289 = smul.u32 64, %s28
        %s290 = smul.u32 4, %s27
        %s291 = smul.u32 64, %s28
        %s292 = smul.u32 4, %s27
        %s293 = smul.u32 4, %s27
        %p294 = scmp.eq.s32.totalorder %s28, 0
        // Predicated region
        $region45: #{tpu_custom_call.1} parent=31 // pred_check
          %p295 = pneg %p294
        $region46: #{tpu_custom_call.1} parent=31 // pred_check_branch
          %297 = sbr.rel (%p295) target = $region48
        $region47: #{tpu_custom_call.1} parent=31 // pred_region
          %298 = vst [vmem:[#allocation2] sm:$0xff] 0.0
          %299 = vst [vmem:[#allocation2 + $0x8] sm:$0xff] 0.0
          %300 = vst [vmem:[#allocation2 + $0x10] sm:$0xff] 0.0
          %301 = vst [vmem:[#allocation2 + $0x18] sm:$0xff] 0.0
          %302 = vst [vmem:[#allocation2 + $0x20] sm:$0xff] 0.0
          %303 = vst [vmem:[#allocation2 + $0x28] sm:$0xff] 0.0
          %304 = vst [vmem:[#allocation2 + $0x30] sm:$0xff] 0.0
          %305 = vst [vmem:[#allocation2 + $0x38] sm:$0xff] 0.0
          %306 = vst [vmem:[#allocation2 + $0x40] sm:$0xf] 0.0
          %307 = vst [vmem:[#allocation2 + $0x48] sm:$0xf] 0.0
          %308 = vst [vmem:[#allocation2 + $0x50] sm:$0xf] 0.0
          %309 = vst [vmem:[#allocation2 + $0x58] sm:$0xf] 0.0
          %310 = vst [vmem:[#allocation3] sm:$0xff] 0.0
          %311 = vst [vmem:[#allocation3 + $0x8] sm:$0xff] 0.0
          %312 = vst [vmem:[#allocation3 + $0x10] sm:$0xff] 0.0
          %313 = vst [vmem:[#allocation3 + $0x18] sm:$0xff] 0.0
          %314 = vst [vmem:[#allocation3 + $0x20] sm:$0xff] 0.0
          %315 = vst [vmem:[#allocation3 + $0x28] sm:$0xff] 0.0
          %316 = vst [vmem:[#allocation3 + $0x30] sm:$0xff] 0.0
          %317 = vst [vmem:[#allocation3 + $0x38] sm:$0xff] 0.0
          %318 = vst [vmem:[#allocation3 + $0x40] sm:$0xf] 0.0
          %319 = vst [vmem:[#allocation3 + $0x48] sm:$0xf] 0.0
          %320 = vst [vmem:[#allocation3 + $0x50] sm:$0xf] 0.0
          %321 = vst [vmem:[#allocation3 + $0x58] sm:$0xf] 0.0
        $region48: #{tpu_custom_call.1} parent=31 // pred_fallthru
          _
        %v322 = vld [vmem:[%s237] sm:$0xff]
        %v323 = vld [vmem:[%s237 + $0x8] sm:$0xff]
        %v324 = vld [vmem:[%s237 + $0x10] sm:$0xff]
        %v325 = vld [vmem:[%s237 + $0x18] sm:$0xff]
        %v326 = vld [vmem:[%s237 + $0x20] sm:$0xff]
        %v327 = vld [vmem:[%s237 + $0x28] sm:$0xff]
        %v328 = vld [vmem:[%s237 + $0x30] sm:$0xff]
        %v329 = vld [vmem:[%s237 + $0x38] sm:$0xff]
        %v330 = vld [vmem:[%s237 + $0x40] sm:$0xf]
        %v331 = vld [vmem:[%s237 + $0x48] sm:$0xf]
        %v332 = vld [vmem:[%s237 + $0x50] sm:$0xf]
        %v333 = vld [vmem:[%s237 + $0x58] sm:$0xf]
        %v334 = vld [vmem:[#allocation2] sm:$0xff]
        %v335 = vld [vmem:[#allocation2 + $0x8] sm:$0xff]
        %v336 = vld [vmem:[#allocation2 + $0x10] sm:$0xff]
        %v337 = vld [vmem:[#allocation2 + $0x18] sm:$0xff]
        %v338 = vld [vmem:[#allocation2 + $0x20] sm:$0xff]
        %v339 = vld [vmem:[#allocation2 + $0x28] sm:$0xff]
        %v340 = vld [vmem:[#allocation2 + $0x30] sm:$0xff]
        %v341 = vld [vmem:[#allocation2 + $0x38] sm:$0xff]
        %v342 = vld [vmem:[#allocation2 + $0x40] sm:$0xf]
        %v343 = vld [vmem:[#allocation2 + $0x48] sm:$0xf]
        %v344 = vld [vmem:[#allocation2 + $0x50] sm:$0xf]
        %v345 = vld [vmem:[#allocation2 + $0x58] sm:$0xf]
        %v346 = vld [vmem:[%s246] sm:$0xff]
        %v347 = vld [vmem:[%s246 + $0x8] sm:$0xff]
        %v348 = vld [vmem:[%s246 + $0x10] sm:$0xff]
        %v349 = vld [vmem:[%s246 + $0x18] sm:$0xff]
        %v350 = vld [vmem:[%s246 + $0x20] sm:$0xff]
        %v351 = vld [vmem:[%s246 + $0x28] sm:$0xff]
        %v352 = vld [vmem:[%s246 + $0x30] sm:$0xff]
        %v353 = vld [vmem:[%s246 + $0x38] sm:$0xff]
        %v354 = vld [vmem:[%s246 + $0x40] sm:$0xff]
        %v355 = vld [vmem:[%s246 + $0x48] sm:$0xff]
        %v356 = vld [vmem:[%s246 + $0x50] sm:$0xff]
        %v357 = vld [vmem:[%s246 + $0x58] sm:$0xff]
        %v358 = vld [vmem:[%s246 + $0x60] sm:$0xff]
        %v359 = vld [vmem:[%s246 + $0x68] sm:$0xff]
        %v360 = vld [vmem:[%s246 + $0x70] sm:$0xff]
        %v361 = vld [vmem:[%s246 + $0x78] sm:$0xff]
        %v362 = vld [vmem:[%s246 + $0x80] sm:$0xff]
        %v363 = vld [vmem:[%s246 + $0x88] sm:$0xff]
        %v364 = vld [vmem:[%s246 + $0x90] sm:$0xff]
        %v365 = vld [vmem:[%s246 + $0x98] sm:$0xff]
        %v366 = vld [vmem:[%s246 + $0xa0] sm:$0xff]
        %v367 = vld [vmem:[%s246 + $0xa8] sm:$0xff]
        %v368 = vld [vmem:[%s246 + $0xb0] sm:$0xff]
        %v369 = vld [vmem:[%s246 + $0xb8] sm:$0xff]
        %v370 = vld [vmem:[%s246 + $0xc0] sm:$0xff]
        %v371 = vld [vmem:[%s246 + $0xc8] sm:$0xff]
        %v372 = vld [vmem:[%s246 + $0xd0] sm:$0xff]
        %v373 = vld [vmem:[%s246 + $0xd8] sm:$0xff]
        %v374 = vld [vmem:[%s246 + $0xe0] sm:$0xff]
        %v375 = vld [vmem:[%s246 + $0xe8] sm:$0xff]
        %v376 = vld [vmem:[%s246 + $0xf0] sm:$0xff]
        %v377 = vld [vmem:[%s246 + $0xf8] sm:$0xff]
        %v378 = vld [vmem:[%s246 + $0x100] sm:$0xff]
        %v379 = vld [vmem:[%s246 + $0x108] sm:$0xff]
        %v380 = vld [vmem:[%s246 + $0x110] sm:$0xff]
        %v381 = vld [vmem:[%s246 + $0x118] sm:$0xff]
        %v382 = vld [vmem:[%s246 + $0x120] sm:$0xff]
        %v383 = vld [vmem:[%s246 + $0x128] sm:$0xff]
        %v384 = vld [vmem:[%s246 + $0x130] sm:$0xff]
        %v385 = vld [vmem:[%s246 + $0x138] sm:$0xff]
        %v386 = vld [vmem:[%s246 + $0x140] sm:$0xff]
        %v387 = vld [vmem:[%s246 + $0x148] sm:$0xff]
        %v388 = vld [vmem:[%s246 + $0x150] sm:$0xff]
        %v389 = vld [vmem:[%s246 + $0x158] sm:$0xff]
        %v390 = vld [vmem:[%s246 + $0x160] sm:$0xff]
        %v391 = vld [vmem:[%s246 + $0x168] sm:$0xff]
        %v392 = vld [vmem:[%s246 + $0x170] sm:$0xff]
        %v393 = vld [vmem:[%s246 + $0x178] sm:$0xff]
        %v394 = vld [vmem:[%s246 + $0x180] sm:$0xff]
        %v395 = vld [vmem:[%s246 + $0x188] sm:$0xff]
        %v396 = vld [vmem:[%s246 + $0x190] sm:$0xff]
        %v397 = vld [vmem:[%s246 + $0x198] sm:$0xff]
        %v398 = vld [vmem:[%s246 + $0x1a0] sm:$0xff]
        %v399 = vld [vmem:[%s246 + $0x1a8] sm:$0xff]
        %v400 = vld [vmem:[%s246 + $0x1b0] sm:$0xff]
        %v401 = vld [vmem:[%s246 + $0x1b8] sm:$0xff]
        %v402 = vld [vmem:[%s246 + $0x1c0] sm:$0xff]
        %v403 = vld [vmem:[%s246 + $0x1c8] sm:$0xff]
        %v404 = vld [vmem:[%s246 + $0x1d0] sm:$0xff]
        %v405 = vld [vmem:[%s246 + $0x1d8] sm:$0xff]
        %v406 = vld [vmem:[%s246 + $0x1e0] sm:$0xff]
        %v407 = vld [vmem:[%s246 + $0x1e8] sm:$0xff]
        %v408 = vld [vmem:[%s246 + $0x1f0] sm:$0xff]
        %v409 = vld [vmem:[%s246 + $0x1f8] sm:$0xff]
        %v410 = vld [vmem:[%s246 + $0x200] sm:$0xff]
        %v411 = vld [vmem:[%s246 + $0x208] sm:$0xff]
        %v412 = vld [vmem:[%s246 + $0x210] sm:$0xff]
        %v413 = vld [vmem:[%s246 + $0x218] sm:$0xff]
        %v414 = vld [vmem:[%s246 + $0x220] sm:$0xff]
        %v415 = vld [vmem:[%s246 + $0x228] sm:$0xff]
        %v416 = vld [vmem:[%s246 + $0x230] sm:$0xff]
        %v417 = vld [vmem:[%s246 + $0x238] sm:$0xff]
        %v418 = vld [vmem:[%s246 + $0x240] sm:$0xff]
        %v419 = vld [vmem:[%s246 + $0x248] sm:$0xff]
        %v420 = vld [vmem:[%s246 + $0x250] sm:$0xff]
        %v421 = vld [vmem:[%s246 + $0x258] sm:$0xff]
        %v422 = vld [vmem:[%s246 + $0x260] sm:$0xff]
        %v423 = vld [vmem:[%s246 + $0x268] sm:$0xff]
        %v424 = vld [vmem:[%s246 + $0x270] sm:$0xff]
        %v425 = vld [vmem:[%s246 + $0x278] sm:$0xff]
        %v426 = vld [vmem:[%s246 + $0x280] sm:$0xff]
        %v427 = vld [vmem:[%s246 + $0x288] sm:$0xff]
        %v428 = vld [vmem:[%s246 + $0x290] sm:$0xff]
        %v429 = vld [vmem:[%s246 + $0x298] sm:$0xff]
        %v430 = vld [vmem:[%s246 + $0x2a0] sm:$0xff]
        %v431 = vld [vmem:[%s246 + $0x2a8] sm:$0xff]
        %v432 = vld [vmem:[%s246 + $0x2b0] sm:$0xff]
        %v433 = vld [vmem:[%s246 + $0x2b8] sm:$0xff]
        %v434 = vld [vmem:[%s246 + $0x2c0] sm:$0xff]
        %v435 = vld [vmem:[%s246 + $0x2c8] sm:$0xff]
        %v436 = vld [vmem:[%s246 + $0x2d0] sm:$0xff]
        %v437 = vld [vmem:[%s246 + $0x2d8] sm:$0xff]
        %v438 = vld [vmem:[%s246 + $0x2e0] sm:$0xff]
        %v439 = vld [vmem:[%s246 + $0x2e8] sm:$0xff]
        %v440 = vld [vmem:[%s246 + $0x2f0] sm:$0xff]
        %v441 = vld [vmem:[%s246 + $0x2f8] sm:$0xff]
        %v442 = vld [vmem:[%s246 + $0x300] sm:$0xff]
        %v443 = vld [vmem:[%s246 + $0x308] sm:$0xff]
        %v444 = vld [vmem:[%s246 + $0x310] sm:$0xff]
        %v445 = vld [vmem:[%s246 + $0x318] sm:$0xff]
        %v446 = vld [vmem:[%s246 + $0x320] sm:$0xff]
        %v447 = vld [vmem:[%s246 + $0x328] sm:$0xff]
        %v448 = vld [vmem:[%s246 + $0x330] sm:$0xff]
        %v449 = vld [vmem:[%s246 + $0x338] sm:$0xff]
        %v450 = vld [vmem:[%s246 + $0x340] sm:$0xff]
        %v451 = vld [vmem:[%s246 + $0x348] sm:$0xff]
        %v452 = vld [vmem:[%s246 + $0x350] sm:$0xff]
        %v453 = vld [vmem:[%s246 + $0x358] sm:$0xff]
        %v454 = vld [vmem:[%s246 + $0x360] sm:$0xff]
        %v455 = vld [vmem:[%s246 + $0x368] sm:$0xff]
        %v456 = vld [vmem:[%s246 + $0x370] sm:$0xff]
        %v457 = vld [vmem:[%s246 + $0x378] sm:$0xff]
        %v458 = vld [vmem:[%s246 + $0x380] sm:$0xff]
        %v459 = vld [vmem:[%s246 + $0x388] sm:$0xff]
        %v460 = vld [vmem:[%s246 + $0x390] sm:$0xff]
        %v461 = vld [vmem:[%s246 + $0x398] sm:$0xff]
        %v462 = vld [vmem:[%s246 + $0x3a0] sm:$0xff]
        %v463 = vld [vmem:[%s246 + $0x3a8] sm:$0xff]
        %v464 = vld [vmem:[%s246 + $0x3b0] sm:$0xff]
        %v465 = vld [vmem:[%s246 + $0x3b8] sm:$0xff]
        %v466 = vld [vmem:[%s246 + $0x3c0] sm:$0xff]
        %v467 = vld [vmem:[%s246 + $0x3c8] sm:$0xff]
        %v468 = vld [vmem:[%s246 + $0x3d0] sm:$0xff]
        %v469 = vld [vmem:[%s246 + $0x3d8] sm:$0xff]
        %v470 = vld [vmem:[%s246 + $0x3e0] sm:$0xff]
        %v471 = vld [vmem:[%s246 + $0x3e8] sm:$0xff]
        %v472 = vld [vmem:[%s246 + $0x3f0] sm:$0xff]
        %v473 = vld [vmem:[%s246 + $0x3f8] sm:$0xff]
        %v474 = vld [vmem:[%s246 + $0x400] sm:$0xff]
        %v475 = vld [vmem:[%s246 + $0x408] sm:$0xff]
        %v476 = vld [vmem:[%s246 + $0x410] sm:$0xff]
        %v477 = vld [vmem:[%s246 + $0x418] sm:$0xff]
        %v478 = vld [vmem:[%s246 + $0x420] sm:$0xff]
        %v479 = vld [vmem:[%s246 + $0x428] sm:$0xff]
        %v480 = vld [vmem:[%s246 + $0x430] sm:$0xff]
        %v481 = vld [vmem:[%s246 + $0x438] sm:$0xff]
        %v482 = vld [vmem:[%s246 + $0x440] sm:$0xff]
        %v483 = vld [vmem:[%s246 + $0x448] sm:$0xff]
        %v484 = vld [vmem:[%s246 + $0x450] sm:$0xff]
        %v485 = vld [vmem:[%s246 + $0x458] sm:$0xff]
        %v486 = vld [vmem:[%s246 + $0x460] sm:$0xff]
        %v487 = vld [vmem:[%s246 + $0x468] sm:$0xff]
        %v488 = vld [vmem:[%s246 + $0x470] sm:$0xff]
        %v489 = vld [vmem:[%s246 + $0x478] sm:$0xff]
        %v490 = vld [vmem:[%s246 + $0x480] sm:$0xff]
        %v491 = vld [vmem:[%s246 + $0x488] sm:$0xff]
        %v492 = vld [vmem:[%s246 + $0x490] sm:$0xff]
        %v493 = vld [vmem:[%s246 + $0x498] sm:$0xff]
        %v494 = vld [vmem:[%s246 + $0x4a0] sm:$0xff]
        %v495 = vld [vmem:[%s246 + $0x4a8] sm:$0xff]
        %v496 = vld [vmem:[%s246 + $0x4b0] sm:$0xff]
        %v497 = vld [vmem:[%s246 + $0x4b8] sm:$0xff]
        %v498 = vld [vmem:[%s246 + $0x4c0] sm:$0xff]
        %v499 = vld [vmem:[%s246 + $0x4c8] sm:$0xff]
        %v500 = vld [vmem:[%s246 + $0x4d0] sm:$0xff]
        %v501 = vld [vmem:[%s246 + $0x4d8] sm:$0xff]
        %v502 = vld [vmem:[%s246 + $0x4e0] sm:$0xff]
        %v503 = vld [vmem:[%s246 + $0x4e8] sm:$0xff]
        %v504 = vld [vmem:[%s246 + $0x4f0] sm:$0xff]
        %v505 = vld [vmem:[%s246 + $0x4f8] sm:$0xff]
        %v506 = vld [vmem:[%s246 + $0x500] sm:$0xff]
        %v507 = vld [vmem:[%s246 + $0x508] sm:$0xff]
        %v508 = vld [vmem:[%s246 + $0x510] sm:$0xff]
        %v509 = vld [vmem:[%s246 + $0x518] sm:$0xff]
        %v510 = vld [vmem:[%s246 + $0x520] sm:$0xff]
        %v511 = vld [vmem:[%s246 + $0x528] sm:$0xff]
        %v512 = vld [vmem:[%s246 + $0x530] sm:$0xff]
        %v513 = vld [vmem:[%s246 + $0x538] sm:$0xff]
        %v514 = vld [vmem:[%s246 + $0x540] sm:$0xff]
        %v515 = vld [vmem:[%s246 + $0x548] sm:$0xff]
        %v516 = vld [vmem:[%s246 + $0x550] sm:$0xff]
        %v517 = vld [vmem:[%s246 + $0x558] sm:$0xff]
        %v518 = vld [vmem:[%s246 + $0x560] sm:$0xff]
        %v519 = vld [vmem:[%s246 + $0x568] sm:$0xff]
        %v520 = vld [vmem:[%s246 + $0x570] sm:$0xff]
        %v521 = vld [vmem:[%s246 + $0x578] sm:$0xff]
        %v522 = vld [vmem:[%s246 + $0x580] sm:$0xff]
        %v523 = vld [vmem:[%s246 + $0x588] sm:$0xff]
        %v524 = vld [vmem:[%s246 + $0x590] sm:$0xff]
        %v525 = vld [vmem:[%s246 + $0x598] sm:$0xff]
        %v526 = vld [vmem:[%s246 + $0x5a0] sm:$0xff]
        %v527 = vld [vmem:[%s246 + $0x5a8] sm:$0xff]
        %v528 = vld [vmem:[%s246 + $0x5b0] sm:$0xff]
        %v529 = vld [vmem:[%s246 + $0x5b8] sm:$0xff]
        %v530 = vld [vmem:[%s246 + $0x5c0] sm:$0xff]
        %v531 = vld [vmem:[%s246 + $0x5c8] sm:$0xff]
        %v532 = vld [vmem:[%s246 + $0x5d0] sm:$0xff]
        %v533 = vld [vmem:[%s246 + $0x5d8] sm:$0xff]
        %v534 = vld [vmem:[%s246 + $0x5e0] sm:$0xff]
        %v535 = vld [vmem:[%s246 + $0x5e8] sm:$0xff]
        %v536 = vld [vmem:[%s246 + $0x5f0] sm:$0xff]
        %v537 = vld [vmem:[%s246 + $0x5f8] sm:$0xff]
        %v538 = vld [vmem:[%s246 + $0x600] sm:$0xff]
        %v539 = vld [vmem:[%s246 + $0x608] sm:$0xff]
        %v540 = vld [vmem:[%s246 + $0x610] sm:$0xff]
        %v541 = vld [vmem:[%s246 + $0x618] sm:$0xff]
        %v542 = vld [vmem:[%s246 + $0x620] sm:$0xff]
        %v543 = vld [vmem:[%s246 + $0x628] sm:$0xff]
        %v544 = vld [vmem:[%s246 + $0x630] sm:$0xff]
        %v545 = vld [vmem:[%s246 + $0x638] sm:$0xff]
        %v546 = vld [vmem:[%s246 + $0x640] sm:$0xff]
        %v547 = vld [vmem:[%s246 + $0x648] sm:$0xff]
        %v548 = vld [vmem:[%s246 + $0x650] sm:$0xff]
        %v549 = vld [vmem:[%s246 + $0x658] sm:$0xff]
        %v550 = vld [vmem:[%s246 + $0x660] sm:$0xff]
        %v551 = vld [vmem:[%s246 + $0x668] sm:$0xff]
        %v552 = vld [vmem:[%s246 + $0x670] sm:$0xff]
        %v553 = vld [vmem:[%s246 + $0x678] sm:$0xff]
        %v554 = vld [vmem:[%s246 + $0x680] sm:$0xff]
        %v555 = vld [vmem:[%s246 + $0x688] sm:$0xff]
        %v556 = vld [vmem:[%s246 + $0x690] sm:$0xff]
        %v557 = vld [vmem:[%s246 + $0x698] sm:$0xff]
        %v558 = vld [vmem:[%s246 + $0x6a0] sm:$0xff]
        %v559 = vld [vmem:[%s246 + $0x6a8] sm:$0xff]
        %v560 = vld [vmem:[%s246 + $0x6b0] sm:$0xff]
        %v561 = vld [vmem:[%s246 + $0x6b8] sm:$0xff]
        %v562 = vld [vmem:[%s246 + $0x6c0] sm:$0xff]
        %v563 = vld [vmem:[%s246 + $0x6c8] sm:$0xff]
        %v564 = vld [vmem:[%s246 + $0x6d0] sm:$0xff]
        %v565 = vld [vmem:[%s246 + $0x6d8] sm:$0xff]
        %v566 = vld [vmem:[%s246 + $0x6e0] sm:$0xff]
        %v567 = vld [vmem:[%s246 + $0x6e8] sm:$0xff]
        %v568 = vld [vmem:[%s246 + $0x6f0] sm:$0xff]
        %v569 = vld [vmem:[%s246 + $0x6f8] sm:$0xff]
        %v570 = vld [vmem:[%s246 + $0x700] sm:$0xff]
        %v571 = vld [vmem:[%s246 + $0x708] sm:$0xff]
        %v572 = vld [vmem:[%s246 + $0x710] sm:$0xff]
        %v573 = vld [vmem:[%s246 + $0x718] sm:$0xff]
        %v574 = vld [vmem:[%s246 + $0x720] sm:$0xff]
        %v575 = vld [vmem:[%s246 + $0x728] sm:$0xff]
        %v576 = vld [vmem:[%s246 + $0x730] sm:$0xff]
        %v577 = vld [vmem:[%s246 + $0x738] sm:$0xff]
        %v578 = vld [vmem:[%s246 + $0x740] sm:$0xff]
        %v579 = vld [vmem:[%s246 + $0x748] sm:$0xff]
        %v580 = vld [vmem:[%s246 + $0x750] sm:$0xff]
        %v581 = vld [vmem:[%s246 + $0x758] sm:$0xff]
        %v582 = vld [vmem:[%s246 + $0x760] sm:$0xff]
        %v583 = vld [vmem:[%s246 + $0x768] sm:$0xff]
        %v584 = vld [vmem:[%s246 + $0x770] sm:$0xff]
        %v585 = vld [vmem:[%s246 + $0x778] sm:$0xff]
        %v586 = vld [vmem:[%s246 + $0x780] sm:$0xff]
        %v587 = vld [vmem:[%s246 + $0x788] sm:$0xff]
        %v588 = vld [vmem:[%s246 + $0x790] sm:$0xff]
        %v589 = vld [vmem:[%s246 + $0x798] sm:$0xff]
        %v590 = vld [vmem:[%s246 + $0x7a0] sm:$0xff]
        %v591 = vld [vmem:[%s246 + $0x7a8] sm:$0xff]
        %v592 = vld [vmem:[%s246 + $0x7b0] sm:$0xff]
        %v593 = vld [vmem:[%s246 + $0x7b8] sm:$0xff]
        %v594 = vld [vmem:[%s246 + $0x7c0] sm:$0xff]
        %v595 = vld [vmem:[%s246 + $0x7c8] sm:$0xff]
        %v596 = vld [vmem:[%s246 + $0x7d0] sm:$0xff]
        %v597 = vld [vmem:[%s246 + $0x7d8] sm:$0xff]
        %v598 = vld [vmem:[%s246 + $0x7e0] sm:$0xff]
        %v599 = vld [vmem:[%s246 + $0x7e8] sm:$0xff]
        %v600 = vld [vmem:[%s246 + $0x7f0] sm:$0xff]
        %v601 = vld [vmem:[%s246 + $0x7f8] sm:$0xff]
        %602 = vmatprep.subr.mxu0 %v347
        %603 = vmatpush1.msra.mxu0 %v346
        %604 = vmatprep.subr.mxu0 %v351
        %605 = vmatpush1.msra.mxu0 %v350
        %606 = vmatprep.subr.mxu0 %v355
        %607 = vmatpush1.msra.mxu0 %v354
        %608 = vmatprep.subr.mxu0 %v359
        %609 = vmatpush1.msra.mxu0 %v358
        %610 = vmatprep.subr.mxu0 %v363
        %611 = vmatpush1.msra.mxu0 %v362
        %612 = vmatprep.subr.mxu0 %v367
        %613 = vmatpush1.msra.mxu0 %v366
        %614 = vmatprep.subr.mxu0 %v371
        %615 = vmatpush1.msra.mxu0 %v370
        %616 = vmatprep.subr.mxu0 %v375
        %617 = vmatpush1.msra.mxu0 %v374
        %618 = vmatprep.subr.mxu0 %v379
        %619 = vmatpush1.msra.mxu0 %v378
        %620 = vmatprep.subr.mxu0 %v383
        %621 = vmatpush1.msra.mxu0 %v382
        %622 = vmatprep.subr.mxu0 %v387
        %623 = vmatpush1.msra.mxu0 %v386
        %624 = vmatprep.subr.mxu0 %v391
        %625 = vmatpush1.msra.mxu0 %v390
        %626 = vmatprep.subr.mxu0 %v395
        %627 = vmatpush1.msra.mxu0 %v394
        %628 = vmatprep.subr.mxu0 %v399
        %629 = vmatpush1.msra.mxu0 %v398
        %630 = vmatprep.subr.mxu0 %v403
        %631 = vmatpush1.msra.mxu0 %v402
        %632 = vmatprep.subr.mxu0 %v407
        %633 = vmatpush1.msra.mxu0 %v406
        %634 = vmatprep.subr.mxu0 %v411
        %635 = vmatpush1.msra.mxu0 %v410
        %636 = vmatprep.subr.mxu0 %v415
        %637 = vmatpush1.msra.mxu0 %v414
        %638 = vmatprep.subr.mxu0 %v419
        %639 = vmatpush1.msra.mxu0 %v418
        %640 = vmatprep.subr.mxu0 %v423
        %641 = vmatpush1.msra.mxu0 %v422
        %642 = vmatprep.subr.mxu0 %v427
        %643 = vmatpush1.msra.mxu0 %v426
        %644 = vmatprep.subr.mxu0 %v431
        %645 = vmatpush1.msra.mxu0 %v430
        %646 = vmatprep.subr.mxu0 %v435
        %647 = vmatpush1.msra.mxu0 %v434
        %648 = vmatprep.subr.mxu0 %v439
        %649 = vmatpush1.msra.mxu0 %v438
        %650 = vmatprep.subr.mxu0 %v443
        %651 = vmatpush1.msra.mxu0 %v442
        %652 = vmatprep.subr.mxu0 %v447
        %653 = vmatpush1.msra.mxu0 %v446
        %654 = vmatprep.subr.mxu0 %v451
        %655 = vmatpush1.msra.mxu0 %v450
        %656 = vmatprep.subr.mxu0 %v455
        %657 = vmatpush1.msra.mxu0 %v454
        %658 = vmatprep.subr.mxu0 %v459
        %659 = vmatpush1.msra.mxu0 %v458
        %660 = vmatprep.subr.mxu0 %v463
        %661 = vmatpush1.msra.mxu0 %v462
        %662 = vmatprep.subr.mxu0 %v467
        %663 = vmatpush1.msra.mxu0 %v466
        %664 = vmatprep.subr.mxu0 %v471
        %665 = vmatpush1.msra.mxu0 %v470
        %666 = vmatprep.mubr.f32.mxu0 %v323
        %667 = vmatmul.mubr.f32.gmra.mrb[0].mxu0 %v322
        %v668 = vpop.f32.mrb[0].mxu0
        %v669 = vadd.f32 0.0, %v668
        %v670 = vpop.f32.mrb[0].mxu0
        %v671 = vadd.f32 0.0, %v670
        %672 = vmatprep.mubr.f32.mxu0 %v327
        %673 = vmatmul.mubr.f32.gmra.mrb[0].mxu0 %v326
        %v674 = vpop.f32.mrb[0].mxu0
        %v675 = vadd.f32 0.0, %v674
        %v676 = vpop.f32.mrb[0].mxu0
        %v677 = vadd.f32 0.0, %v676
        %678 = vmatprep.mubr.f32.mxu0 %v331
        %679 = vmatmul.mubr.f32.gmra.mrb[0].mxu0 %v330
        %v680 = vpop.f32.mrb[0].mxu0
        %v681 = vadd.f32 0.0, %v680
        %v682 = vpop.f32.mrb[0].mxu0
        %v683 = vadd.f32 0.0, %v682
        %684 = vdwg.mxu0
        %685 = vmatprep.subr.mxu0 %v475
        %686 = vmatpush1.msra.mxu0 %v474
        %687 = vmatprep.subr.mxu0 %v479
        %688 = vmatpush1.msra.mxu0 %v478
        %689 = vmatprep.subr.mxu0 %v483
        %690 = vmatpush1.msra.mxu0 %v482
        %691 = vmatprep.subr.mxu0 %v487
        %692 = vmatpush1.msra.mxu0 %v486
        %693 = vmatprep.subr.mxu0 %v491
        %694 = vmatpush1.msra.mxu0 %v490
        %695 = vmatprep.subr.mxu0 %v495
        %696 = vmatpush1.msra.mxu0 %v494
        %697 = vmatprep.subr.mxu0 %v499
        %698 = vmatpush1.msra.mxu0 %v498
        %699 = vmatprep.subr.mxu0 %v503
        %700 = vmatpush1.msra.mxu0 %v502
        %701 = vmatprep.subr.mxu0 %v507
        %702 = vmatpush1.msra.mxu0 %v506
        %703 = vmatprep.subr.mxu0 %v511
        %704 = vmatpush1.msra.mxu0 %v510
        %705 = vmatprep.subr.mxu0 %v515
        %706 = vmatpush1.msra.mxu0 %v514
        %707 = vmatprep.subr.mxu0 %v519
        %708 = vmatpush1.msra.mxu0 %v518
        %709 = vmatprep.subr.mxu0 %v523
        %710 = vmatpush1.msra.mxu0 %v522
        %711 = vmatprep.subr.mxu0 %v527
        %712 = vmatpush1.msra.mxu0 %v526
        %713 = vmatprep.subr.mxu0 %v531
        %714 = vmatpush1.msra.mxu0 %v530
        %715 = vmatprep.subr.mxu0 %v535
        %716 = vmatpush1.msra.mxu0 %v534
        %717 = vmatprep.subr.mxu0 %v539
        %718 = vmatpush1.msra.mxu0 %v538
        %719 = vmatprep.subr.mxu0 %v543
        %720 = vmatpush1.msra.mxu0 %v542
        %721 = vmatprep.subr.mxu0 %v547
        %722 = vmatpush1.msra.mxu0 %v546
        %723 = vmatprep.subr.mxu0 %v551
        %724 = vmatpush1.msra.mxu0 %v550
        %725 = vmatprep.subr.mxu0 %v555
        %726 = vmatpush1.msra.mxu0 %v554
        %727 = vmatprep.subr.mxu0 %v559
        %728 = vmatpush1.msra.mxu0 %v558
        %729 = vmatprep.subr.mxu0 %v563
        %730 = vmatpush1.msra.mxu0 %v562
        %731 = vmatprep.subr.mxu0 %v567
        %732 = vmatpush1.msra.mxu0 %v566
        %733 = vmatprep.subr.mxu0 %v571
        %734 = vmatpush1.msra.mxu0 %v570
        %735 = vmatprep.subr.mxu0 %v575
        %736 = vmatpush1.msra.mxu0 %v574
        %737 = vmatprep.subr.mxu0 %v579
        %738 = vmatpush1.msra.mxu0 %v578
        %739 = vmatprep.subr.mxu0 %v583
        %740 = vmatpush1.msra.mxu0 %v582
        %741 = vmatprep.subr.mxu0 %v587
        %742 = vmatpush1.msra.mxu0 %v586
        %743 = vmatprep.subr.mxu0 %v591
        %744 = vmatpush1.msra.mxu0 %v590
        %745 = vmatprep.subr.mxu0 %v595
        %746 = vmatpush1.msra.mxu0 %v594
        %747 = vmatprep.subr.mxu0 %v599
        %748 = vmatpush1.msra.mxu0 %v598
        %749 = vmatprep.mubr.f32.mxu0 %v325
        %750 = vmatmul.mubr.f32.gmra.mrb[0].mxu0 %v324
        %v751 = vpop.f32.mrb[0].mxu0
        %v752 = vadd.f32 %v669, %v751
        %v753 = vpop.f32.mrb[0].mxu0
        %v754 = vadd.f32 %v671, %v753
        %755 = vmatprep.mubr.f32.mxu0 %v329
        %756 = vmatmul.mubr.f32.gmra.mrb[0].mxu0 %v328
        %v757 = vpop.f32.mrb[0].mxu0
        %v758 = vadd.f32 %v675, %v757
        %v759 = vpop.f32.mrb[0].mxu0
        %v760 = vadd.f32 %v677, %v759
        %761 = vmatprep.mubr.f32.mxu0 %v333
        %762 = vmatmul.mubr.f32.gmra.mrb[0].mxu0 %v332
        %v763 = vpop.f32.mrb[0].mxu0
        %v764 = vadd.f32 %v681, %v763
        %v765 = vpop.f32.mrb[0].mxu0
        %v766 = vadd.f32 %v683, %v765
        %767 = vdwg.mxu0
        %768 = vmatprep.subr.mxu0 %v349
        %769 = vmatpush1.msra.mxu0 %v348
        %770 = vmatprep.subr.mxu0 %v353
        %771 = vmatpush1.msra.mxu0 %v352
        %772 = vmatprep.subr.mxu0 %v357
        %773 = vmatpush1.msra.mxu0 %v356
        %774 = vmatprep.subr.mxu0 %v361
        %775 = vmatpush1.msra.mxu0 %v360
        %776 = vmatprep.subr.mxu0 %v365
        %777 = vmatpush1.msra.mxu0 %v364
        %778 = vmatprep.subr.mxu0 %v369
        %779 = vmatpush1.msra.mxu0 %v368
        %780 = vmatprep.subr.mxu0 %v373
        %781 = vmatpush1.msra.mxu0 %v372
        %782 = vmatprep.subr.mxu0 %v377
        %783 = vmatpush1.msra.mxu0 %v376
        %784 = vmatprep.subr.mxu0 %v381
        %785 = vmatpush1.msra.mxu0 %v380
        %786 = vmatprep.subr.mxu0 %v385
        %787 = vmatpush1.msra.mxu0 %v384
        %788 = vmatprep.subr.mxu0 %v389
        %789 = vmatpush1.msra.mxu0 %v388
        %790 = vmatprep.subr.mxu0 %v393
        %791 = vmatpush1.msra.mxu0 %v392
        %792 = vmatprep.subr.mxu0 %v397
        %793 = vmatpush1.msra.mxu0 %v396
        %794 = vmatprep.subr.mxu0 %v401
        %795 = vmatpush1.msra.mxu0 %v400
        %796 = vmatprep.subr.mxu0 %v405
        %797 = vmatpush1.msra.mxu0 %v404
        %798 = vmatprep.subr.mxu0 %v409
        %799 = vmatpush1.msra.mxu0 %v408
        %800 = vmatprep.subr.mxu0 %v413
        %801 = vmatpush1.msra.mxu0 %v412
        %802 = vmatprep.subr.mxu0 %v417
        %803 = vmatpush1.msra.mxu0 %v416
        %804 = vmatprep.subr.mxu0 %v421
        %805 = vmatpush1.msra.mxu0 %v420
        %806 = vmatprep.subr.mxu0 %v425
        %807 = vmatpush1.msra.mxu0 %v424
        %808 = vmatprep.subr.mxu0 %v429
        %809 = vmatpush1.msra.mxu0 %v428
        %810 = vmatprep.subr.mxu0 %v433
        %811 = vmatpush1.msra.mxu0 %v432
        %812 = vmatprep.subr.mxu0 %v437
        %813 = vmatpush1.msra.mxu0 %v436
        %814 = vmatprep.subr.mxu0 %v441
        %815 = vmatpush1.msra.mxu0 %v440
        %816 = vmatprep.subr.mxu0 %v445
        %817 = vmatpush1.msra.mxu0 %v444
        %818 = vmatprep.subr.mxu0 %v449
        %819 = vmatpush1.msra.mxu0 %v448
        %820 = vmatprep.subr.mxu0 %v453
        %821 = vmatpush1.msra.mxu0 %v452
        %822 = vmatprep.subr.mxu0 %v457
        %823 = vmatpush1.msra.mxu0 %v456
        %824 = vmatprep.subr.mxu0 %v461
        %825 = vmatpush1.msra.mxu0 %v460
        %826 = vmatprep.subr.mxu0 %v465
        %827 = vmatpush1.msra.mxu0 %v464
        %828 = vmatprep.subr.mxu0 %v469
        %829 = vmatpush1.msra.mxu0 %v468
        %830 = vmatprep.subr.mxu0 %v473
        %831 = vmatpush1.msra.mxu0 %v472
        %832 = vmatprep.mubr.f32.mxu0 %v323
        %833 = vmatmul.mubr.f32.gmra.mrb[0].mxu0 %v322
        %v834 = vpop.f32.mrb[0].mxu0
        %v835 = vadd.f32 0.0, %v834
        %v836 = vpop.f32.mrb[0].mxu0
        %v837 = vadd.f32 0.0, %v836
        %838 = vmatprep.mubr.f32.mxu0 %v327
        %839 = vmatmul.mubr.f32.gmra.mrb[0].mxu0 %v326
        %v840 = vpop.f32.mrb[0].mxu0
        %v841 = vadd.f32 0.0, %v840
        %v842 = vpop.f32.mrb[0].mxu0
        %v843 = vadd.f32 0.0, %v842
        %844 = vmatprep.mubr.f32.mxu0 %v331
        %845 = vmatmul.mubr.f32.gmra.mrb[0].mxu0 %v330
        %v846 = vpop.f32.mrb[0].mxu0
        %v847 = vadd.f32 0.0, %v846
        %v848 = vpop.f32.mrb[0].mxu0
        %v849 = vadd.f32 0.0, %v848
        %850 = vdwg.mxu0
        %851 = vmatprep.subr.mxu0 %v477
        %852 = vmatpush1.msra.mxu0 %v476
        %853 = vmatprep.subr.mxu0 %v481
        %854 = vmatpush1.msra.mxu0 %v480
        %855 = vmatprep.subr.mxu0 %v485
        %856 = vmatpush1.msra.mxu0 %v484
        %857 = vmatprep.subr.mxu0 %v489
        %858 = vmatpush1.msra.mxu0 %v488
        %859 = vmatprep.subr.mxu0 %v493
        %860 = vmatpush1.msra.mxu0 %v492
        %861 = vmatprep.subr.mxu0 %v497
        %862 = vmatpush1.msra.mxu0 %v496
        %863 = vmatprep.subr.mxu0 %v501
        %864 = vmatpush1.msra.mxu0 %v500
        %865 = vmatprep.subr.mxu0 %v505
        %866 = vmatpush1.msra.mxu0 %v504
        %867 = vmatprep.subr.mxu0 %v509
        %868 = vmatpush1.msra.mxu0 %v508
        %869 = vmatprep.subr.mxu0 %v513
        %870 = vmatpush1.msra.mxu0 %v512
        %871 = vmatprep.subr.mxu0 %v517
        %872 = vmatpush1.msra.mxu0 %v516
        %873 = vmatprep.subr.mxu0 %v521
        %874 = vmatpush1.msra.mxu0 %v520
        %875 = vmatprep.subr.mxu0 %v525
        %876 = vmatpush1.msra.mxu0 %v524
        %877 = vmatprep.subr.mxu0 %v529
        %878 = vmatpush1.msra.mxu0 %v528
        %879 = vmatprep.subr.mxu0 %v533
        %880 = vmatpush1.msra.mxu0 %v532
        %881 = vmatprep.subr.mxu0 %v537
        %882 = vmatpush1.msra.mxu0 %v536
        %883 = vmatprep.subr.mxu0 %v541
        %884 = vmatpush1.msra.mxu0 %v540
        %885 = vmatprep.subr.mxu0 %v545
        %886 = vmatpush1.msra.mxu0 %v544
        %887 = vmatprep.subr.mxu0 %v549
        %888 = vmatpush1.msra.mxu0 %v548
        %889 = vmatprep.subr.mxu0 %v553
        %890 = vmatpush1.msra.mxu0 %v552
        %891 = vmatprep.subr.mxu0 %v557
        %892 = vmatpush1.msra.mxu0 %v556
        %893 = vmatprep.subr.mxu0 %v561
        %894 = vmatpush1.msra.mxu0 %v560
        %895 = vmatprep.subr.mxu0 %v565
        %896 = vmatpush1.msra.mxu0 %v564
        %897 = vmatprep.subr.mxu0 %v569
        %898 = vmatpush1.msra.mxu0 %v568
        %899 = vmatprep.subr.mxu0 %v573
        %900 = vmatpush1.msra.mxu0 %v572
        %901 = vmatprep.subr.mxu0 %v577
        %902 = vmatpush1.msra.mxu0 %v576
        %903 = vmatprep.subr.mxu0 %v581
        %904 = vmatpush1.msra.mxu0 %v580
        %905 = vmatprep.subr.mxu0 %v585
        %906 = vmatpush1.msra.mxu0 %v584
        %907 = vmatprep.subr.mxu0 %v589
        %908 = vmatpush1.msra.mxu0 %v588
        %909 = vmatprep.subr.mxu0 %v593
        %910 = vmatpush1.msra.mxu0 %v592
        %911 = vmatprep.subr.mxu0 %v597
        %912 = vmatpush1.msra.mxu0 %v596
        %913 = vmatprep.subr.mxu0 %v601
        %914 = vmatpush1.msra.mxu0 %v600
        %915 = vmatprep.mubr.f32.mxu0 %v325
        %916 = vmatmul.mubr.f32.gmra.mrb[0].mxu0 %v324
        %v917 = vpop.f32.mrb[0].mxu0
        %v918 = vadd.f32 %v835, %v917
        %v919 = vpop.f32.mrb[0].mxu0
        %v920 = vadd.f32 %v837, %v919
        %921 = vmatprep.mubr.f32.mxu0 %v329
        %922 = vmatmul.mubr.f32.gmra.mrb[0].mxu0 %v328
        %v923 = vpop.f32.mrb[0].mxu0
        %v924 = vadd.f32 %v841, %v923
        %v925 = vpop.f32.mrb[0].mxu0
        %v926 = vadd.f32 %v843, %v925
        %927 = vmatprep.mubr.f32.mxu0 %v333
        %928 = vmatmul.mubr.f32.gmra.mrb[0].mxu0 %v332
        %v929 = vpop.f32.mrb[0].mxu0
        %v930 = vadd.f32 %v847, %v929
        %v931 = vpop.f32.mrb[0].mxu0
        %v932 = vadd.f32 %v849, %v931
        %933 = vdwg.mxu0
        %v934 = vadd.f32 %v334, %v752
        %v935 = vadd.f32 %v335, %v754
        %v936 = vadd.f32 %v336, %v918
        %v937 = vadd.f32 %v337, %v920
        %v938 = vadd.f32 %v338, %v758
        %v939 = vadd.f32 %v339, %v760
        %v940 = vadd.f32 %v340, %v924
        %v941 = vadd.f32 %v341, %v926
        %v942 = vadd.f32 %v342, %v764
        %v943 = vadd.f32 %v343, %v766
        %v944 = vadd.f32 %v344, %v930
        %v945 = vadd.f32 %v345, %v932
        %946 = vst [vmem:[#allocation2] sm:$0xff] %v934
        %947 = vst [vmem:[#allocation2 + $0x8] sm:$0xff] %v935
        %948 = vst [vmem:[#allocation2 + $0x10] sm:$0xff] %v936
        %949 = vst [vmem:[#allocation2 + $0x18] sm:$0xff] %v937
        %950 = vst [vmem:[#allocation2 + $0x20] sm:$0xff] %v938
        %951 = vst [vmem:[#allocation2 + $0x28] sm:$0xff] %v939
        %952 = vst [vmem:[#allocation2 + $0x30] sm:$0xff] %v940
        %953 = vst [vmem:[#allocation2 + $0x38] sm:$0xff] %v941
        %954 = vst [vmem:[#allocation2 + $0x40] sm:$0xf] %v942
        %955 = vst [vmem:[#allocation2 + $0x48] sm:$0xf] %v943
        %956 = vst [vmem:[#allocation2 + $0x50] sm:$0xf] %v944
        %957 = vst [vmem:[#allocation2 + $0x58] sm:$0xf] %v945
        %v958 = vld [vmem:[#allocation3] sm:$0xff]
        %v959 = vld [vmem:[#allocation3 + $0x8] sm:$0xff]
        %v960 = vld [vmem:[#allocation3 + $0x10] sm:$0xff]
        %v961 = vld [vmem:[#allocation3 + $0x18] sm:$0xff]
        %v962 = vld [vmem:[#allocation3 + $0x20] sm:$0xff]
        %v963 = vld [vmem:[#allocation3 + $0x28] sm:$0xff]
        %v964 = vld [vmem:[#allocation3 + $0x30] sm:$0xff]
        %v965 = vld [vmem:[#allocation3 + $0x38] sm:$0xff]
        %v966 = vld [vmem:[#allocation3 + $0x40] sm:$0xf]
        %v967 = vld [vmem:[#allocation3 + $0x48] sm:$0xf]
        %v968 = vld [vmem:[#allocation3 + $0x50] sm:$0xf]
        %v969 = vld [vmem:[#allocation3 + $0x58] sm:$0xf]
        %v970 = vld [vmem:[%s255] sm:$0xff]
        %v971 = vld [vmem:[%s255 + $0x8] sm:$0xff]
        %v972 = vld [vmem:[%s255 + $0x10] sm:$0xff]
        %v973 = vld [vmem:[%s255 + $0x18] sm:$0xff]
        %v974 = vld [vmem:[%s255 + $0x20] sm:$0xff]
        %v975 = vld [vmem:[%s255 + $0x28] sm:$0xff]
        %v976 = vld [vmem:[%s255 + $0x30] sm:$0xff]
        %v977 = vld [vmem:[%s255 + $0x38] sm:$0xff]
        %v978 = vld [vmem:[%s255 + $0x40] sm:$0xff]
        %v979 = vld [vmem:[%s255 + $0x48] sm:$0xff]
        %v980 = vld [vmem:[%s255 + $0x50] sm:$0xff]
        %v981 = vld [vmem:[%s255 + $0x58] sm:$0xff]
        %v982 = vld [vmem:[%s255 + $0x60] sm:$0xff]
        %v983 = vld [vmem:[%s255 + $0x68] sm:$0xff]
        %v984 = vld [vmem:[%s255 + $0x70] sm:$0xff]
        %v985 = vld [vmem:[%s255 + $0x78] sm:$0xff]
        %v986 = vld [vmem:[%s255 + $0x80] sm:$0xff]
        %v987 = vld [vmem:[%s255 + $0x88] sm:$0xff]
        %v988 = vld [vmem:[%s255 + $0x90] sm:$0xff]
        %v989 = vld [vmem:[%s255 + $0x98] sm:$0xff]
        %v990 = vld [vmem:[%s255 + $0xa0] sm:$0xff]
        %v991 = vld [vmem:[%s255 + $0xa8] sm:$0xff]
        %v992 = vld [vmem:[%s255 + $0xb0] sm:$0xff]
        %v993 = vld [vmem:[%s255 + $0xb8] sm:$0xff]
        %v994 = vld [vmem:[%s255 + $0xc0] sm:$0xff]
        %v995 = vld [vmem:[%s255 + $0xc8] sm:$0xff]
        %v996 = vld [vmem:[%s255 + $0xd0] sm:$0xff]
        %v997 = vld [vmem:[%s255 + $0xd8] sm:$0xff]
        %v998 = vld [vmem:[%s255 + $0xe0] sm:$0xff]
        %v999 = vld [vmem:[%s255 + $0xe8] sm:$0xff]
        %v1000 = vld [vmem:[%s255 + $0xf0] sm:$0xff]
        %v1001 = vld [vmem:[%s255 + $0xf8] sm:$0xff]
        %v1002 = vld [vmem:[%s255 + $0x100] sm:$0xff]
        %v1003 = vld [vmem:[%s255 + $0x108] sm:$0xff]
        %v1004 = vld [vmem:[%s255 + $0x110] sm:$0xff]
        %v1005 = vld [vmem:[%s255 + $0x118] sm:$0xff]
        %v1006 = vld [vmem:[%s255 + $0x120] sm:$0xff]
        %v1007 = vld [vmem:[%s255 + $0x128] sm:$0xff]
        %v1008 = vld [vmem:[%s255 + $0x130] sm:$0xff]
        %v1009 = vld [vmem:[%s255 + $0x138] sm:$0xff]
        %v1010 = vld [vmem:[%s255 + $0x140] sm:$0xff]
        %v1011 = vld [vmem:[%s255 + $0x148] sm:$0xff]
        %v1012 = vld [vmem:[%s255 + $0x150] sm:$0xff]
        %v1013 = vld [vmem:[%s255 + $0x158] sm:$0xff]
        %v1014 = vld [vmem:[%s255 + $0x160] sm:$0xff]
        %v1015 = vld [vmem:[%s255 + $0x168] sm:$0xff]
        %v1016 = vld [vmem:[%s255 + $0x170] sm:$0xff]
        %v1017 = vld [vmem:[%s255 + $0x178] sm:$0xff]
        %v1018 = vld [vmem:[%s255 + $0x180] sm:$0xff]
        %v1019 = vld [vmem:[%s255 + $0x188] sm:$0xff]
        %v1020 = vld [vmem:[%s255 + $0x190] sm:$0xff]
        %v1021 = vld [vmem:[%s255 + $0x198] sm:$0xff]
        %v1022 = vld [vmem:[%s255 + $0x1a0] sm:$0xff]
        %v1023 = vld [vmem:[%s255 + $0x1a8] sm:$0xff]
        %v1024 = vld [vmem:[%s255 + $0x1b0] sm:$0xff]
        %v1025 = vld [vmem:[%s255 + $0x1b8] sm:$0xff]
        %v1026 = vld [vmem:[%s255 + $0x1c0] sm:$0xff]
        %v1027 = vld [vmem:[%s255 + $0x1c8] sm:$0xff]
        %v1028 = vld [vmem:[%s255 + $0x1d0] sm:$0xff]
        %v1029 = vld [vmem:[%s255 + $0x1d8] sm:$0xff]
        %v1030 = vld [vmem:[%s255 + $0x1e0] sm:$0xff]
        %v1031 = vld [vmem:[%s255 + $0x1e8] sm:$0xff]
        %v1032 = vld [vmem:[%s255 + $0x1f0] sm:$0xff]
        %v1033 = vld [vmem:[%s255 + $0x1f8] sm:$0xff]
        %v1034 = vld [vmem:[%s255 + $0x200] sm:$0xff]
        %v1035 = vld [vmem:[%s255 + $0x208] sm:$0xff]
        %v1036 = vld [vmem:[%s255 + $0x210] sm:$0xff]
        %v1037 = vld [vmem:[%s255 + $0x218] sm:$0xff]
        %v1038 = vld [vmem:[%s255 + $0x220] sm:$0xff]
        %v1039 = vld [vmem:[%s255 + $0x228] sm:$0xff]
        %v1040 = vld [vmem:[%s255 + $0x230] sm:$0xff]
        %v1041 = vld [vmem:[%s255 + $0x238] sm:$0xff]
        %v1042 = vld [vmem:[%s255 + $0x240] sm:$0xff]
        %v1043 = vld [vmem:[%s255 + $0x248] sm:$0xff]
        %v1044 = vld [vmem:[%s255 + $0x250] sm:$0xff]
        %v1045 = vld [vmem:[%s255 + $0x258] sm:$0xff]
        %v1046 = vld [vmem:[%s255 + $0x260] sm:$0xff]
        %v1047 = vld [vmem:[%s255 + $0x268] sm:$0xff]
        %v1048 = vld [vmem:[%s255 + $0x270] sm:$0xff]
        %v1049 = vld [vmem:[%s255 + $0x278] sm:$0xff]
        %v1050 = vld [vmem:[%s255 + $0x280] sm:$0xff]
        %v1051 = vld [vmem:[%s255 + $0x288] sm:$0xff]
        %v1052 = vld [vmem:[%s255 + $0x290] sm:$0xff]
        %v1053 = vld [vmem:[%s255 + $0x298] sm:$0xff]
        %v1054 = vld [vmem:[%s255 + $0x2a0] sm:$0xff]
        %v1055 = vld [vmem:[%s255 + $0x2a8] sm:$0xff]
        %v1056 = vld [vmem:[%s255 + $0x2b0] sm:$0xff]
        %v1057 = vld [vmem:[%s255 + $0x2b8] sm:$0xff]
        %v1058 = vld [vmem:[%s255 + $0x2c0] sm:$0xff]
        %v1059 = vld [vmem:[%s255 + $0x2c8] sm:$0xff]
        %v1060 = vld [vmem:[%s255 + $0x2d0] sm:$0xff]
        %v1061 = vld [vmem:[%s255 + $0x2d8] sm:$0xff]
        %v1062 = vld [vmem:[%s255 + $0x2e0] sm:$0xff]
        %v1063 = vld [vmem:[%s255 + $0x2e8] sm:$0xff]
        %v1064 = vld [vmem:[%s255 + $0x2f0] sm:$0xff]
        %v1065 = vld [vmem:[%s255 + $0x2f8] sm:$0xff]
        %v1066 = vld [vmem:[%s255 + $0x300] sm:$0xff]
        %v1067 = vld [vmem:[%s255 + $0x308] sm:$0xff]
        %v1068 = vld [vmem:[%s255 + $0x310] sm:$0xff]
        %v1069 = vld [vmem:[%s255 + $0x318] sm:$0xff]
        %v1070 = vld [vmem:[%s255 + $0x320] sm:$0xff]
        %v1071 = vld [vmem:[%s255 + $0x328] sm:$0xff]
        %v1072 = vld [vmem:[%s255 + $0x330] sm:$0xff]
        %v1073 = vld [vmem:[%s255 + $0x338] sm:$0xff]
        %v1074 = vld [vmem:[%s255 + $0x340] sm:$0xff]
        %v1075 = vld [vmem:[%s255 + $0x348] sm:$0xff]
        %v1076 = vld [vmem:[%s255 + $0x350] sm:$0xff]
        %v1077 = vld [vmem:[%s255 + $0x358] sm:$0xff]
        %v1078 = vld [vmem:[%s255 + $0x360] sm:$0xff]
        %v1079 = vld [vmem:[%s255 + $0x368] sm:$0xff]
        %v1080 = vld [vmem:[%s255 + $0x370] sm:$0xff]
        %v1081 = vld [vmem:[%s255 + $0x378] sm:$0xff]
        %v1082 = vld [vmem:[%s255 + $0x380] sm:$0xff]
        %v1083 = vld [vmem:[%s255 + $0x388] sm:$0xff]
        %v1084 = vld [vmem:[%s255 + $0x390] sm:$0xff]
        %v1085 = vld [vmem:[%s255 + $0x398] sm:$0xff]
        %v1086 = vld [vmem:[%s255 + $0x3a0] sm:$0xff]
        %v1087 = vld [vmem:[%s255 + $0x3a8] sm:$0xff]
        %v1088 = vld [vmem:[%s255 + $0x3b0] sm:$0xff]
        %v1089 = vld [vmem:[%s255 + $0x3b8] sm:$0xff]
        %v1090 = vld [vmem:[%s255 + $0x3c0] sm:$0xff]
        %v1091 = vld [vmem:[%s255 + $0x3c8] sm:$0xff]
        %v1092 = vld [vmem:[%s255 + $0x3d0] sm:$0xff]
        %v1093 = vld [vmem:[%s255 + $0x3d8] sm:$0xff]
        %v1094 = vld [vmem:[%s255 + $0x3e0] sm:$0xff]
        %v1095 = vld [vmem:[%s255 + $0x3e8] sm:$0xff]
        %v1096 = vld [vmem:[%s255 + $0x3f0] sm:$0xff]
        %v1097 = vld [vmem:[%s255 + $0x3f8] sm:$0xff]
        %v1098 = vld [vmem:[%s255 + $0x400] sm:$0xff]
        %v1099 = vld [vmem:[%s255 + $0x408] sm:$0xff]
        %v1100 = vld [vmem:[%s255 + $0x410] sm:$0xff]
        %v1101 = vld [vmem:[%s255 + $0x418] sm:$0xff]
        %v1102 = vld [vmem:[%s255 + $0x420] sm:$0xff]
        %v1103 = vld [vmem:[%s255 + $0x428] sm:$0xff]
        %v1104 = vld [vmem:[%s255 + $0x430] sm:$0xff]
        %v1105 = vld [vmem:[%s255 + $0x438] sm:$0xff]
        %v1106 = vld [vmem:[%s255 + $0x440] sm:$0xff]
        %v1107 = vld [vmem:[%s255 + $0x448] sm:$0xff]
        %v1108 = vld [vmem:[%s255 + $0x450] sm:$0xff]
        %v1109 = vld [vmem:[%s255 + $0x458] sm:$0xff]
        %v1110 = vld [vmem:[%s255 + $0x460] sm:$0xff]
        %v1111 = vld [vmem:[%s255 + $0x468] sm:$0xff]
        %v1112 = vld [vmem:[%s255 + $0x470] sm:$0xff]
        %v1113 = vld [vmem:[%s255 + $0x478] sm:$0xff]
        %v1114 = vld [vmem:[%s255 + $0x480] sm:$0xff]
        %v1115 = vld [vmem:[%s255 + $0x488] sm:$0xff]
        %v1116 = vld [vmem:[%s255 + $0x490] sm:$0xff]
        %v1117 = vld [vmem:[%s255 + $0x498] sm:$0xff]
        %v1118 = vld [vmem:[%s255 + $0x4a0] sm:$0xff]
        %v1119 = vld [vmem:[%s255 + $0x4a8] sm:$0xff]
        %v1120 = vld [vmem:[%s255 + $0x4b0] sm:$0xff]
        %v1121 = vld [vmem:[%s255 + $0x4b8] sm:$0xff]
        %v1122 = vld [vmem:[%s255 + $0x4c0] sm:$0xff]
        %v1123 = vld [vmem:[%s255 + $0x4c8] sm:$0xff]
        %v1124 = vld [vmem:[%s255 + $0x4d0] sm:$0xff]
        %v1125 = vld [vmem:[%s255 + $0x4d8] sm:$0xff]
        %v1126 = vld [vmem:[%s255 + $0x4e0] sm:$0xff]
        %v1127 = vld [vmem:[%s255 + $0x4e8] sm:$0xff]
        %v1128 = vld [vmem:[%s255 + $0x4f0] sm:$0xff]
        %v1129 = vld [vmem:[%s255 + $0x4f8] sm:$0xff]
        %v1130 = vld [vmem:[%s255 + $0x500] sm:$0xff]
        %v1131 = vld [vmem:[%s255 + $0x508] sm:$0xff]
        %v1132 = vld [vmem:[%s255 + $0x510] sm:$0xff]
        %v1133 = vld [vmem:[%s255 + $0x518] sm:$0xff]
        %v1134 = vld [vmem:[%s255 + $0x520] sm:$0xff]
        %v1135 = vld [vmem:[%s255 + $0x528] sm:$0xff]
        %v1136 = vld [vmem:[%s255 + $0x530] sm:$0xff]
        %v1137 = vld [vmem:[%s255 + $0x538] sm:$0xff]
        %v1138 = vld [vmem:[%s255 + $0x540] sm:$0xff]
        %v1139 = vld [vmem:[%s255 + $0x548] sm:$0xff]
        %v1140 = vld [vmem:[%s255 + $0x550] sm:$0xff]
        %v1141 = vld [vmem:[%s255 + $0x558] sm:$0xff]
        %v1142 = vld [vmem:[%s255 + $0x560] sm:$0xff]
        %v1143 = vld [vmem:[%s255 + $0x568] sm:$0xff]
        %v1144 = vld [vmem:[%s255 + $0x570] sm:$0xff]
        %v1145 = vld [vmem:[%s255 + $0x578] sm:$0xff]
        %v1146 = vld [vmem:[%s255 + $0x580] sm:$0xff]
        %v1147 = vld [vmem:[%s255 + $0x588] sm:$0xff]
        %v1148 = vld [vmem:[%s255 + $0x590] sm:$0xff]
        %v1149 = vld [vmem:[%s255 + $0x598] sm:$0xff]
        %v1150 = vld [vmem:[%s255 + $0x5a0] sm:$0xff]
        %v1151 = vld [vmem:[%s255 + $0x5a8] sm:$0xff]
        %v1152 = vld [vmem:[%s255 + $0x5b0] sm:$0xff]
        %v1153 = vld [vmem:[%s255 + $0x5b8] sm:$0xff]
        %v1154 = vld [vmem:[%s255 + $0x5c0] sm:$0xff]
        %v1155 = vld [vmem:[%s255 + $0x5c8] sm:$0xff]
        %v1156 = vld [vmem:[%s255 + $0x5d0] sm:$0xff]
        %v1157 = vld [vmem:[%s255 + $0x5d8] sm:$0xff]
        %v1158 = vld [vmem:[%s255 + $0x5e0] sm:$0xff]
        %v1159 = vld [vmem:[%s255 + $0x5e8] sm:$0xff]
        %v1160 = vld [vmem:[%s255 + $0x5f0] sm:$0xff]
        %v1161 = vld [vmem:[%s255 + $0x5f8] sm:$0xff]
        %v1162 = vld [vmem:[%s255 + $0x600] sm:$0xff]
        %v1163 = vld [vmem:[%s255 + $0x608] sm:$0xff]
        %v1164 = vld [vmem:[%s255 + $0x610] sm:$0xff]
        %v1165 = vld [vmem:[%s255 + $0x618] sm:$0xff]
        %v1166 = vld [vmem:[%s255 + $0x620] sm:$0xff]
        %v1167 = vld [vmem:[%s255 + $0x628] sm:$0xff]
        %v1168 = vld [vmem:[%s255 + $0x630] sm:$0xff]
        %v1169 = vld [vmem:[%s255 + $0x638] sm:$0xff]
        %v1170 = vld [vmem:[%s255 + $0x640] sm:$0xff]
        %v1171 = vld [vmem:[%s255 + $0x648] sm:$0xff]
        %v1172 = vld [vmem:[%s255 + $0x650] sm:$0xff]
        %v1173 = vld [vmem:[%s255 + $0x658] sm:$0xff]
        %v1174 = vld [vmem:[%s255 + $0x660] sm:$0xff]
        %v1175 = vld [vmem:[%s255 + $0x668] sm:$0xff]
        %v1176 = vld [vmem:[%s255 + $0x670] sm:$0xff]
        %v1177 = vld [vmem:[%s255 + $0x678] sm:$0xff]
        %v1178 = vld [vmem:[%s255 + $0x680] sm:$0xff]
        %v1179 = vld [vmem:[%s255 + $0x688] sm:$0xff]
        %v1180 = vld [vmem:[%s255 + $0x690] sm:$0xff]
        %v1181 = vld [vmem:[%s255 + $0x698] sm:$0xff]
        %v1182 = vld [vmem:[%s255 + $0x6a0] sm:$0xff]
        %v1183 = vld [vmem:[%s255 + $0x6a8] sm:$0xff]
        %v1184 = vld [vmem:[%s255 + $0x6b0] sm:$0xff]
        %v1185 = vld [vmem:[%s255 + $0x6b8] sm:$0xff]
        %v1186 = vld [vmem:[%s255 + $0x6c0] sm:$0xff]
        %v1187 = vld [vmem:[%s255 + $0x6c8] sm:$0xff]
        %v1188 = vld [vmem:[%s255 + $0x6d0] sm:$0xff]
        %v1189 = vld [vmem:[%s255 + $0x6d8] sm:$0xff]
        %v1190 = vld [vmem:[%s255 + $0x6e0] sm:$0xff]
        %v1191 = vld [vmem:[%s255 + $0x6e8] sm:$0xff]
        %v1192 = vld [vmem:[%s255 + $0x6f0] sm:$0xff]
        %v1193 = vld [vmem:[%s255 + $0x6f8] sm:$0xff]
        %v1194 = vld [vmem:[%s255 + $0x700] sm:$0xff]
        %v1195 = vld [vmem:[%s255 + $0x708] sm:$0xff]
        %v1196 = vld [vmem:[%s255 + $0x710] sm:$0xff]
        %v1197 = vld [vmem:[%s255 + $0x718] sm:$0xff]
        %v1198 = vld [vmem:[%s255 + $0x720] sm:$0xff]
        %v1199 = vld [vmem:[%s255 + $0x728] sm:$0xff]
        %v1200 = vld [vmem:[%s255 + $0x730] sm:$0xff]
        %v1201 = vld [vmem:[%s255 + $0x738] sm:$0xff]
        %v1202 = vld [vmem:[%s255 + $0x740] sm:$0xff]
        %v1203 = vld [vmem:[%s255 + $0x748] sm:$0xff]
        %v1204 = vld [vmem:[%s255 + $0x750] sm:$0xff]
        %v1205 = vld [vmem:[%s255 + $0x758] sm:$0xff]
        %v1206 = vld [vmem:[%s255 + $0x760] sm:$0xff]
        %v1207 = vld [vmem:[%s255 + $0x768] sm:$0xff]
        %v1208 = vld [vmem:[%s255 + $0x770] sm:$0xff]
        %v1209 = vld [vmem:[%s255 + $0x778] sm:$0xff]
        %v1210 = vld [vmem:[%s255 + $0x780] sm:$0xff]
        %v1211 = vld [vmem:[%s255 + $0x788] sm:$0xff]
        %v1212 = vld [vmem:[%s255 + $0x790] sm:$0xff]
        %v1213 = vld [vmem:[%s255 + $0x798] sm:$0xff]
        %v1214 = vld [vmem:[%s255 + $0x7a0] sm:$0xff]
        %v1215 = vld [vmem:[%s255 + $0x7a8] sm:$0xff]
        %v1216 = vld [vmem:[%s255 + $0x7b0] sm:$0xff]
        %v1217 = vld [vmem:[%s255 + $0x7b8] sm:$0xff]
        %v1218 = vld [vmem:[%s255 + $0x7c0] sm:$0xff]
        %v1219 = vld [vmem:[%s255 + $0x7c8] sm:$0xff]
        %v1220 = vld [vmem:[%s255 + $0x7d0] sm:$0xff]
        %v1221 = vld [vmem:[%s255 + $0x7d8] sm:$0xff]
        %v1222 = vld [vmem:[%s255 + $0x7e0] sm:$0xff]
        %v1223 = vld [vmem:[%s255 + $0x7e8] sm:$0xff]
        %v1224 = vld [vmem:[%s255 + $0x7f0] sm:$0xff]
        %v1225 = vld [vmem:[%s255 + $0x7f8] sm:$0xff]
        %1226 = vmatprep.subr.mxu0 %v971
        %1227 = vmatpush1.msra.mxu0 %v970
        %1228 = vmatprep.subr.mxu0 %v975
        %1229 = vmatpush1.msra.mxu0 %v974
        %1230 = vmatprep.subr.mxu0 %v979
        %1231 = vmatpush1.msra.mxu0 %v978
        %1232 = vmatprep.subr.mxu0 %v983
        %1233 = vmatpush1.msra.mxu0 %v982
        %1234 = vmatprep.subr.mxu0 %v987
        %1235 = vmatpush1.msra.mxu0 %v986
        %1236 = vmatprep.subr.mxu0 %v991
        %1237 = vmatpush1.msra.mxu0 %v990
        %1238 = vmatprep.subr.mxu0 %v995
        %1239 = vmatpush1.msra.mxu0 %v994
        %1240 = vmatprep.subr.mxu0 %v999
        %1241 = vmatpush1.msra.mxu0 %v998
        %1242 = vmatprep.subr.mxu0 %v1003
        %1243 = vmatpush1.msra.mxu0 %v1002
        %1244 = vmatprep.subr.mxu0 %v1007
        %1245 = vmatpush1.msra.mxu0 %v1006
        %1246 = vmatprep.subr.mxu0 %v1011
        %1247 = vmatpush1.msra.mxu0 %v1010
        %1248 = vmatprep.subr.mxu0 %v1015
        %1249 = vmatpush1.msra.mxu0 %v1014
        %1250 = vmatprep.subr.mxu0 %v1019
        %1251 = vmatpush1.msra.mxu0 %v1018
        %1252 = vmatprep.subr.mxu0 %v1023
        %1253 = vmatpush1.msra.mxu0 %v1022
        %1254 = vmatprep.subr.mxu0 %v1027
        %1255 = vmatpush1.msra.mxu0 %v1026
        %1256 = vmatprep.subr.mxu0 %v1031
        %1257 = vmatpush1.msra.mxu0 %v1030
        %1258 = vmatprep.subr.mxu0 %v1035
        %1259 = vmatpush1.msra.mxu0 %v1034
        %1260 = vmatprep.subr.mxu0 %v1039
        %1261 = vmatpush1.msra.mxu0 %v1038
        %1262 = vmatprep.subr.mxu0 %v1043
        %1263 = vmatpush1.msra.mxu0 %v1042
        %1264 = vmatprep.subr.mxu0 %v1047
        %1265 = vmatpush1.msra.mxu0 %v1046
        %1266 = vmatprep.subr.mxu0 %v1051
        %1267 = vmatpush1.msra.mxu0 %v1050
        %1268 = vmatprep.subr.mxu0 %v1055
        %1269 = vmatpush1.msra.mxu0 %v1054
        %1270 = vmatprep.subr.mxu0 %v1059
        %1271 = vmatpush1.msra.mxu0 %v1058
        %1272 = vmatprep.subr.mxu0 %v1063
        %1273 = vmatpush1.msra.mxu0 %v1062
        %1274 = vmatprep.subr.mxu0 %v1067
        %1275 = vmatpush1.msra.mxu0 %v1066
        %1276 = vmatprep.subr.mxu0 %v1071
        %1277 = vmatpush1.msra.mxu0 %v1070
        %1278 = vmatprep.subr.mxu0 %v1075
        %1279 = vmatpush1.msra.mxu0 %v1074
        %1280 = vmatprep.subr.mxu0 %v1079
        %1281 = vmatpush1.msra.mxu0 %v1078
        %1282 = vmatprep.subr.mxu0 %v1083
        %1283 = vmatpush1.msra.mxu0 %v1082
        %1284 = vmatprep.subr.mxu0 %v1087
        %1285 = vmatpush1.msra.mxu0 %v1086
        %1286 = vmatprep.subr.mxu0 %v1091
        %1287 = vmatpush1.msra.mxu0 %v1090
        %1288 = vmatprep.subr.mxu0 %v1095
        %1289 = vmatpush1.msra.mxu0 %v1094
        %1290 = vmatprep.mubr.f32.mxu0 %v323
        %1291 = vmatmul.mubr.f32.gmra.mrb[0].mxu0 %v322
        %v1292 = vpop.f32.mrb[0].mxu0
        %v1293 = vadd.f32 0.0, %v1292
        %v1294 = vpop.f32.mrb[0].mxu0
        %v1295 = vadd.f32 0.0, %v1294
        %1296 = vmatprep.mubr.f32.mxu0 %v327
        %1297 = vmatmul.mubr.f32.gmra.mrb[0].mxu0 %v326
        %v1298 = vpop.f32.mrb[0].mxu0
        %v1299 = vadd.f32 0.0, %v1298
        %v1300 = vpop.f32.mrb[0].mxu0
        %v1301 = vadd.f32 0.0, %v1300
        %1302 = vmatprep.mubr.f32.mxu0 %v331
        %1303 = vmatmul.mubr.f32.gmra.mrb[0].mxu0 %v330
        %v1304 = vpop.f32.mrb[0].mxu0
        %v1305 = vadd.f32 0.0, %v1304
        %v1306 = vpop.f32.mrb[0].mxu0
        %v1307 = vadd.f32 0.0, %v1306
        %1308 = vdwg.mxu0
        %1309 = vmatprep.subr.mxu0 %v1099
        %1310 = vmatpush1.msra.mxu0 %v1098
        %1311 = vmatprep.subr.mxu0 %v1103
        %1312 = vmatpush1.msra.mxu0 %v1102
        %1313 = vmatprep.subr.mxu0 %v1107
        %1314 = vmatpush1.msra.mxu0 %v1106
        %1315 = vmatprep.subr.mxu0 %v1111
        %1316 = vmatpush1.msra.mxu0 %v1110
        %1317 = vmatprep.subr.mxu0 %v1115
        %1318 = vmatpush1.msra.mxu0 %v1114
        %1319 = vmatprep.subr.mxu0 %v1119
        %1320 = vmatpush1.msra.mxu0 %v1118
        %1321 = vmatprep.subr.mxu0 %v1123
        %1322 = vmatpush1.msra.mxu0 %v1122
        %1323 = vmatprep.subr.mxu0 %v1127
        %1324 = vmatpush1.msra.mxu0 %v1126
        %1325 = vmatprep.subr.mxu0 %v1131
        %1326 = vmatpush1.msra.mxu0 %v1130
        %1327 = vmatprep.subr.mxu0 %v1135
        %1328 = vmatpush1.msra.mxu0 %v1134
        %1329 = vmatprep.subr.mxu0 %v1139
        %1330 = vmatpush1.msra.mxu0 %v1138
        %1331 = vmatprep.subr.mxu0 %v1143
        %1332 = vmatpush1.msra.mxu0 %v1142
        %1333 = vmatprep.subr.mxu0 %v1147
        %1334 = vmatpush1.msra.mxu0 %v1146
        %1335 = vmatprep.subr.mxu0 %v1151
        %1336 = vmatpush1.msra.mxu0 %v1150
        %1337 = vmatprep.subr.mxu0 %v1155
        %1338 = vmatpush1.msra.mxu0 %v1154
        %1339 = vmatprep.subr.mxu0 %v1159
        %1340 = vmatpush1.msra.mxu0 %v1158
        %1341 = vmatprep.subr.mxu0 %v1163
        %1342 = vmatpush1.msra.mxu0 %v1162
        %1343 = vmatprep.subr.mxu0 %v1167
        %1344 = vmatpush1.msra.mxu0 %v1166
        %1345 = vmatprep.subr.mxu0 %v1171
        %1346 = vmatpush1.msra.mxu0 %v1170
        %1347 = vmatprep.subr.mxu0 %v1175
        %1348 = vmatpush1.msra.mxu0 %v1174
        %1349 = vmatprep.subr.mxu0 %v1179
        %1350 = vmatpush1.msra.mxu0 %v1178
        %1351 = vmatprep.subr.mxu0 %v1183
        %1352 = vmatpush1.msra.mxu0 %v1182
        %1353 = vmatprep.subr.mxu0 %v1187
        %1354 = vmatpush1.msra.mxu0 %v1186
        %1355 = vmatprep.subr.mxu0 %v1191
        %1356 = vmatpush1.msra.mxu0 %v1190
        %1357 = vmatprep.subr.mxu0 %v1195
        %1358 = vmatpush1.msra.mxu0 %v1194
        %1359 = vmatprep.subr.mxu0 %v1199
        %1360 = vmatpush1.msra.mxu0 %v1198
        %1361 = vmatprep.subr.mxu0 %v1203
        %1362 = vmatpush1.msra.mxu0 %v1202
        %1363 = vmatprep.subr.mxu0 %v1207
        %1364 = vmatpush1.msra.mxu0 %v1206
        %1365 = vmatprep.subr.mxu0 %v1211
        %1366 = vmatpush1.msra.mxu0 %v1210
        %1367 = vmatprep.subr.mxu0 %v1215
        %1368 = vmatpush1.msra.mxu0 %v1214
        %1369 = vmatprep.subr.mxu0 %v1219
        %1370 = vmatpush1.msra.mxu0 %v1218
        %1371 = vmatprep.subr.mxu0 %v1223
        %1372 = vmatpush1.msra.mxu0 %v1222
        %1373 = vmatprep.mubr.f32.mxu0 %v325
        %1374 = vmatmul.mubr.f32.gmra.mrb[0].mxu0 %v324
        %v1375 = vpop.f32.mrb[0].mxu0
        %v1376 = vadd.f32 %v1293, %v1375
        %v1377 = vpop.f32.mrb[0].mxu0
        %v1378 = vadd.f32 %v1295, %v1377
        %1379 = vmatprep.mubr.f32.mxu0 %v329
        %1380 = vmatmul.mubr.f32.gmra.mrb[0].mxu0 %v328
        %v1381 = vpop.f32.mrb[0].mxu0
        %v1382 = vadd.f32 %v1299, %v1381
        %v1383 = vpop.f32.mrb[0].mxu0
        %v1384 = vadd.f32 %v1301, %v1383
        %1385 = vmatprep.mubr.f32.mxu0 %v333
        %1386 = vmatmul.mubr.f32.gmra.mrb[0].mxu0 %v332
        %v1387 = vpop.f32.mrb[0].mxu0
        %v1388 = vadd.f32 %v1305, %v1387
        %v1389 = vpop.f32.mrb[0].mxu0
        %v1390 = vadd.f32 %v1307, %v1389
        %1391 = vdwg.mxu0
        %1392 = vmatprep.subr.mxu0 %v973
        %1393 = vmatpush1.msra.mxu0 %v972
        %1394 = vmatprep.subr.mxu0 %v977
        %1395 = vmatpush1.msra.mxu0 %v976
        %1396 = vmatprep.subr.mxu0 %v981
        %1397 = vmatpush1.msra.mxu0 %v980
        %1398 = vmatprep.subr.mxu0 %v985
        %1399 = vmatpush1.msra.mxu0 %v984
        %1400 = vmatprep.subr.mxu0 %v989
        %1401 = vmatpush1.msra.mxu0 %v988
        %1402 = vmatprep.subr.mxu0 %v993
        %1403 = vmatpush1.msra.mxu0 %v992
        %1404 = vmatprep.subr.mxu0 %v997
        %1405 = vmatpush1.msra.mxu0 %v996
        %1406 = vmatprep.subr.mxu0 %v1001
        %1407 = vmatpush1.msra.mxu0 %v1000
        %1408 = vmatprep.subr.mxu0 %v1005
        %1409 = vmatpush1.msra.mxu0 %v1004
        %1410 = vmatprep.subr.mxu0 %v1009
        %1411 = vmatpush1.msra.mxu0 %v1008
        %1412 = vmatprep.subr.mxu0 %v1013
        %1413 = vmatpush1.msra.mxu0 %v1012
        %1414 = vmatprep.subr.mxu0 %v1017
        %1415 = vmatpush1.msra.mxu0 %v1016
        %1416 = vmatprep.subr.mxu0 %v1021
        %1417 = vmatpush1.msra.mxu0 %v1020
        %1418 = vmatprep.subr.mxu0 %v1025
        %1419 = vmatpush1.msra.mxu0 %v1024
        %1420 = vmatprep.subr.mxu0 %v1029
        %1421 = vmatpush1.msra.mxu0 %v1028
        %1422 = vmatprep.subr.mxu0 %v1033
        %1423 = vmatpush1.msra.mxu0 %v1032
        %1424 = vmatprep.subr.mxu0 %v1037
        %1425 = vmatpush1.msra.mxu0 %v1036
        %1426 = vmatprep.subr.mxu0 %v1041
        %1427 = vmatpush1.msra.mxu0 %v1040
        %1428 = vmatprep.subr.mxu0 %v1045
        %1429 = vmatpush1.msra.mxu0 %v1044
        %1430 = vmatprep.subr.mxu0 %v1049
        %1431 = vmatpush1.msra.mxu0 %v1048
        %1432 = vmatprep.subr.mxu0 %v1053
        %1433 = vmatpush1.msra.mxu0 %v1052
        %1434 = vmatprep.subr.mxu0 %v1057
        %1435 = vmatpush1.msra.mxu0 %v1056
        %1436 = vmatprep.subr.mxu0 %v1061
        %1437 = vmatpush1.msra.mxu0 %v1060
        %1438 = vmatprep.subr.mxu0 %v1065
        %1439 = vmatpush1.msra.mxu0 %v1064
        %1440 = vmatprep.subr.mxu0 %v1069
        %1441 = vmatpush1.msra.mxu0 %v1068
        %1442 = vmatprep.subr.mxu0 %v1073
        %1443 = vmatpush1.msra.mxu0 %v1072
        %1444 = vmatprep.subr.mxu0 %v1077
        %1445 = vmatpush1.msra.mxu0 %v1076
        %1446 = vmatprep.subr.mxu0 %v1081
        %1447 = vmatpush1.msra.mxu0 %v1080
        %1448 = vmatprep.subr.mxu0 %v1085
        %1449 = vmatpush1.msra.mxu0 %v1084
        %1450 = vmatprep.subr.mxu0 %v1089
        %1451 = vmatpush1.msra.mxu0 %v1088
        %1452 = vmatprep.subr.mxu0 %v1093
        %1453 = vmatpush1.msra.mxu0 %v1092
        %1454 = vmatprep.subr.mxu0 %v1097
        %1455 = vmatpush1.msra.mxu0 %v1096
        %1456 = vmatprep.mubr.f32.mxu0 %v323
        %1457 = vmatmul.mubr.f32.gmra.mrb[0].mxu0 %v322
        %v1458 = vpop.f32.mrb[0].mxu0
        %v1459 = vadd.f32 0.0, %v1458
        %v1460 = vpop.f32.mrb[0].mxu0
        %v1461 = vadd.f32 0.0, %v1460
        %1462 = vmatprep.mubr.f32.mxu0 %v327
        %1463 = vmatmul.mubr.f32.gmra.mrb[0].mxu0 %v326
        %v1464 = vpop.f32.mrb[0].mxu0
        %v1465 = vadd.f32 0.0, %v1464
        %v1466 = vpop.f32.mrb[0].mxu0
        %v1467 = vadd.f32 0.0, %v1466
        %1468 = vmatprep.mubr.f32.mxu0 %v331
        %1469 = vmatmul.mubr.f32.gmra.mrb[0].mxu0 %v330
        %v1470 = vpop.f32.mrb[0].mxu0
        %v1471 = vadd.f32 0.0, %v1470
        %v1472 = vpop.f32.mrb[0].mxu0
        %v1473 = vadd.f32 0.0, %v1472
        %1474 = vdwg.mxu0
        %1475 = vmatprep.subr.mxu0 %v1101
        %1476 = vmatpush1.msra.mxu0 %v1100
        %1477 = vmatprep.subr.mxu0 %v1105
        %1478 = vmatpush1.msra.mxu0 %v1104
        %1479 = vmatprep.subr.mxu0 %v1109
        %1480 = vmatpush1.msra.mxu0 %v1108
        %1481 = vmatprep.subr.mxu0 %v1113
        %1482 = vmatpush1.msra.mxu0 %v1112
        %1483 = vmatprep.subr.mxu0 %v1117
        %1484 = vmatpush1.msra.mxu0 %v1116
        %1485 = vmatprep.subr.mxu0 %v1121
        %1486 = vmatpush1.msra.mxu0 %v1120
        %1487 = vmatprep.subr.mxu0 %v1125
        %1488 = vmatpush1.msra.mxu0 %v1124
        %1489 = vmatprep.subr.mxu0 %v1129
        %1490 = vmatpush1.msra.mxu0 %v1128
        %1491 = vmatprep.subr.mxu0 %v1133
        %1492 = vmatpush1.msra.mxu0 %v1132
        %1493 = vmatprep.subr.mxu0 %v1137
        %1494 = vmatpush1.msra.mxu0 %v1136
        %1495 = vmatprep.subr.mxu0 %v1141
        %1496 = vmatpush1.msra.mxu0 %v1140
        %1497 = vmatprep.subr.mxu0 %v1145
        %1498 = vmatpush1.msra.mxu0 %v1144
        %1499 = vmatprep.subr.mxu0 %v1149
        %1500 = vmatpush1.msra.mxu0 %v1148
        %1501 = vmatprep.subr.mxu0 %v1153
        %1502 = vmatpush1.msra.mxu0 %v1152
        %1503 = vmatprep.subr.mxu0 %v1157
        %1504 = vmatpush1.msra.mxu0 %v1156
        %1505 = vmatprep.subr.mxu0 %v1161
        %1506 = vmatpush1.msra.mxu0 %v1160
        %1507 = vmatprep.subr.mxu0 %v1165
        %1508 = vmatpush1.msra.mxu0 %v1164
        %1509 = vmatprep.subr.mxu0 %v1169
        %1510 = vmatpush1.msra.mxu0 %v1168
        %1511 = vmatprep.subr.mxu0 %v1173
        %1512 = vmatpush1.msra.mxu0 %v1172
        %1513 = vmatprep.subr.mxu0 %v1177
        %1514 = vmatpush1.msra.mxu0 %v1176
        %1515 = vmatprep.subr.mxu0 %v1181
        %1516 = vmatpush1.msra.mxu0 %v1180
        %1517 = vmatprep.subr.mxu0 %v1185
        %1518 = vmatpush1.msra.mxu0 %v1184
        %1519 = vmatprep.subr.mxu0 %v1189
        %1520 = vmatpush1.msra.mxu0 %v1188
        %1521 = vmatprep.subr.mxu0 %v1193
        %1522 = vmatpush1.msra.mxu0 %v1192
        %1523 = vmatprep.subr.mxu0 %v1197
        %1524 = vmatpush1.msra.mxu0 %v1196
        %1525 = vmatprep.subr.mxu0 %v1201
        %1526 = vmatpush1.msra.mxu0 %v1200
        %1527 = vmatprep.subr.mxu0 %v1205
        %1528 = vmatpush1.msra.mxu0 %v1204
        %1529 = vmatprep.subr.mxu0 %v1209
        %1530 = vmatpush1.msra.mxu0 %v1208
        %1531 = vmatprep.subr.mxu0 %v1213
        %1532 = vmatpush1.msra.mxu0 %v1212
        %1533 = vmatprep.subr.mxu0 %v1217
        %1534 = vmatpush1.msra.mxu0 %v1216
        %1535 = vmatprep.subr.mxu0 %v1221
        %1536 = vmatpush1.msra.mxu0 %v1220
        %1537 = vmatprep.subr.mxu0 %v1225
        %1538 = vmatpush1.msra.mxu0 %v1224
        %1539 = vmatprep.mubr.f32.mxu0 %v325
        %1540 = vmatmul.mubr.f32.gmra.mrb[0].mxu0 %v324
        %v1541 = vpop.f32.mrb[0].mxu0
        %v1542 = vadd.f32 %v1459, %v1541
        %v1543 = vpop.f32.mrb[0].mxu0
        %v1544 = vadd.f32 %v1461, %v1543
        %1545 = vmatprep.mubr.f32.mxu0 %v329
        %1546 = vmatmul.mubr.f32.gmra.mrb[0].mxu0 %v328
        %v1547 = vpop.f32.mrb[0].mxu0
        %v1548 = vadd.f32 %v1465, %v1547
        %v1549 = vpop.f32.mrb[0].mxu0
        %v1550 = vadd.f32 %v1467, %v1549
        %1551 = vmatprep.mubr.f32.mxu0 %v333
        %1552 = vmatmul.mubr.f32.gmra.mrb[0].mxu0 %v332
        %v1553 = vpop.f32.mrb[0].mxu0
        %v1554 = vadd.f32 %v1471, %v1553
        %v1555 = vpop.f32.mrb[0].mxu0
        %v1556 = vadd.f32 %v1473, %v1555
        %1557 = vdwg.mxu0
        %v1558 = vadd.f32 %v958, %v1376
        %v1559 = vadd.f32 %v959, %v1378
        %v1560 = vadd.f32 %v960, %v1542
        %v1561 = vadd.f32 %v961, %v1544
        %v1562 = vadd.f32 %v962, %v1382
        %v1563 = vadd.f32 %v963, %v1384
        %v1564 = vadd.f32 %v964, %v1548
        %v1565 = vadd.f32 %v965, %v1550
        %v1566 = vadd.f32 %v966, %v1388
        %v1567 = vadd.f32 %v967, %v1390
        %v1568 = vadd.f32 %v968, %v1554
        %v1569 = vadd.f32 %v969, %v1556
        %1570 = vst [vmem:[#allocation3] sm:$0xff] %v1558
        %1571 = vst [vmem:[#allocation3 + $0x8] sm:$0xff] %v1559
        %1572 = vst [vmem:[#allocation3 + $0x10] sm:$0xff] %v1560
        %1573 = vst [vmem:[#allocation3 + $0x18] sm:$0xff] %v1561
        %1574 = vst [vmem:[#allocation3 + $0x20] sm:$0xff] %v1562
        %1575 = vst [vmem:[#allocation3 + $0x28] sm:$0xff] %v1563
        %1576 = vst [vmem:[#allocation3 + $0x30] sm:$0xff] %v1564
        %1577 = vst [vmem:[#allocation3 + $0x38] sm:$0xff] %v1565
        %1578 = vst [vmem:[#allocation3 + $0x40] sm:$0xf] %v1566
        %1579 = vst [vmem:[#allocation3 + $0x48] sm:$0xf] %v1567
        %1580 = vst [vmem:[#allocation3 + $0x50] sm:$0xf] %v1568
        %1581 = vst [vmem:[#allocation3 + $0x58] sm:$0xf] %v1569
        %p1582 = scmp.eq.s32.totalorder %s28, 3
        // Predicated region
        $region49: #{tpu_custom_call.1} parent=31 // pred_check
          %p1583 = pneg %p1582
        $region50: #{tpu_custom_call.1} parent=31 // pred_check_branch
          %1585 = sbr.rel (%p1583) target = $region52
        $region51: #{tpu_custom_call.1} parent=31 // pred_region
          %v1586 = vld [vmem:[#allocation2] sm:$0xff]
          %v1587 = vld [vmem:[#allocation2 + $0x8] sm:$0xff]
          %v1588 = vld [vmem:[#allocation2 + $0x10] sm:$0xff]
          %v1589 = vld [vmem:[#allocation2 + $0x18] sm:$0xff]
          %v1590 = vld [vmem:[#allocation2 + $0x20] sm:$0xff]
          %v1591 = vld [vmem:[#allocation2 + $0x28] sm:$0xff]
          %v1592 = vld [vmem:[#allocation2 + $0x30] sm:$0xff]
          %v1593 = vld [vmem:[#allocation2 + $0x38] sm:$0xff]
          %v1594 = vld [vmem:[#allocation2 + $0x40] sm:$0xf]
          %v1595 = vld [vmem:[#allocation2 + $0x48] sm:$0xf]
          %v1596 = vld [vmem:[#allocation2 + $0x50] sm:$0xf]
          %v1597 = vld [vmem:[#allocation2 + $0x58] sm:$0xf]
          %v1598 = vmul.f32 %v1586, %v1586
          %v1599 = vmul.f32 %v1587, %v1587
          %v1600 = vmul.f32 %v1588, %v1588
          %v1601 = vmul.f32 %v1589, %v1589
          %v1602 = vmul.f32 %v1590, %v1590
          %v1603 = vmul.f32 %v1591, %v1591
          %v1604 = vmul.f32 %v1592, %v1592
          %v1605 = vmul.f32 %v1593, %v1593
          %v1606 = vmul.f32 %v1594, %v1594
          %v1607 = vmul.f32 %v1595, %v1595
          %v1608 = vmul.f32 %v1596, %v1596
          %v1609 = vmul.f32 %v1597, %v1597
          %v1610 = vld [vmem:[#allocation3] sm:$0xff]
          %v1611 = vld [vmem:[#allocation3 + $0x8] sm:$0xff]
          %v1612 = vld [vmem:[#allocation3 + $0x10] sm:$0xff]
          %v1613 = vld [vmem:[#allocation3 + $0x18] sm:$0xff]
          %v1614 = vld [vmem:[#allocation3 + $0x20] sm:$0xff]
          %v1615 = vld [vmem:[#allocation3 + $0x28] sm:$0xff]
          %v1616 = vld [vmem:[#allocation3 + $0x30] sm:$0xff]
          %v1617 = vld [vmem:[#allocation3 + $0x38] sm:$0xff]
          %v1618 = vld [vmem:[#allocation3 + $0x40] sm:$0xf]
          %v1619 = vld [vmem:[#allocation3 + $0x48] sm:$0xf]
          %v1620 = vld [vmem:[#allocation3 + $0x50] sm:$0xf]
          %v1621 = vld [vmem:[#allocation3 + $0x58] sm:$0xf]
          %v1622 = vmul.f32 %v1610, %v1610
          %v1623 = vmul.f32 %v1611, %v1611
          %v1624 = vmul.f32 %v1612, %v1612
          %v1625 = vmul.f32 %v1613, %v1613
          %v1626 = vmul.f32 %v1614, %v1614
          %v1627 = vmul.f32 %v1615, %v1615
          %v1628 = vmul.f32 %v1616, %v1616
          %v1629 = vmul.f32 %v1617, %v1617
          %v1630 = vmul.f32 %v1618, %v1618
          %v1631 = vmul.f32 %v1619, %v1619
          %v1632 = vmul.f32 %v1620, %v1620
          %v1633 = vmul.f32 %v1621, %v1621
          %v1634 = vadd.f32 %v1598, %v1622
          %v1635 = vadd.f32 %v1599, %v1623
          %v1636 = vadd.f32 %v1600, %v1624
          %v1637 = vadd.f32 %v1601, %v1625
          %v1638 = vadd.f32 %v1602, %v1626
          %v1639 = vadd.f32 %v1603, %v1627
          %v1640 = vadd.f32 %v1604, %v1628
          %v1641 = vadd.f32 %v1605, %v1629
          %v1642 = vadd.f32 %v1606, %v1630
          %v1643 = vadd.f32 %v1607, %v1631
          %v1644 = vadd.f32 %v1608, %v1632
          %v1645 = vadd.f32 %v1609, %v1633
          %v1646 = vrsqrt.pop %v1634
          %v1647 = vmul.f32 %v1634, %v1646
          %vm1648 = vcmp.eq.f32.partialorder %v1634, inf
          %v1649 = vsel %vm1648, %v1634, %v1647
          %vm1650 = vcmp.eq.f32.partialorder %v1634, 0.0
          %v1651 = vand.u32 %v1634, 2147483648
          %v1652 = vsel %vm1650, %v1651, %v1649
          %v1653 = vrsqrt.pop %v1635
          %v1654 = vmul.f32 %v1635, %v1653
          %vm1655 = vcmp.eq.f32.partialorder %v1635, inf
          %v1656 = vsel %vm1655, %v1635, %v1654
          %vm1657 = vcmp.eq.f32.partialorder %v1635, 0.0
          %v1658 = vand.u32 %v1635, 2147483648
          %v1659 = vsel %vm1657, %v1658, %v1656
          %v1660 = vrsqrt.pop %v1636
          %v1661 = vmul.f32 %v1636, %v1660
          %vm1662 = vcmp.eq.f32.partialorder %v1636, inf
          %v1663 = vsel %vm1662, %v1636, %v1661
          %vm1664 = vcmp.eq.f32.partialorder %v1636, 0.0
          %v1665 = vand.u32 %v1636, 2147483648
          %v1666 = vsel %vm1664, %v1665, %v1663
          %v1667 = vrsqrt.pop %v1637
          %v1668 = vmul.f32 %v1637, %v1667
          %vm1669 = vcmp.eq.f32.partialorder %v1637, inf
          %v1670 = vsel %vm1669, %v1637, %v1668
          %vm1671 = vcmp.eq.f32.partialorder %v1637, 0.0
          %v1672 = vand.u32 %v1637, 2147483648
          %v1673 = vsel %vm1671, %v1672, %v1670
          %v1674 = vrsqrt.pop %v1638
          %v1675 = vmul.f32 %v1638, %v1674
          %vm1676 = vcmp.eq.f32.partialorder %v1638, inf
          %v1677 = vsel %vm1676, %v1638, %v1675
          %vm1678 = vcmp.eq.f32.partialorder %v1638, 0.0
          %v1679 = vand.u32 %v1638, 2147483648
          %v1680 = vsel %vm1678, %v1679, %v1677
          %v1681 = vrsqrt.pop %v1639
          %v1682 = vmul.f32 %v1639, %v1681
          %vm1683 = vcmp.eq.f32.partialorder %v1639, inf
          %v1684 = vsel %vm1683, %v1639, %v1682
          %vm1685 = vcmp.eq.f32.partialorder %v1639, 0.0
          %v1686 = vand.u32 %v1639, 2147483648
          %v1687 = vsel %vm1685, %v1686, %v1684
          %v1688 = vrsqrt.pop %v1640
          %v1689 = vmul.f32 %v1640, %v1688
          %vm1690 = vcmp.eq.f32.partialorder %v1640, inf
          %v1691 = vsel %vm1690, %v1640, %v1689
          %vm1692 = vcmp.eq.f32.partialorder %v1640, 0.0
          %v1693 = vand.u32 %v1640, 2147483648
          %v1694 = vsel %vm1692, %v1693, %v1691
          %v1695 = vrsqrt.pop %v1641
          %v1696 = vmul.f32 %v1641, %v1695
          %vm1697 = vcmp.eq.f32.partialorder %v1641, inf
          %v1698 = vsel %vm1697, %v1641, %v1696
          %vm1699 = vcmp.eq.f32.partialorder %v1641, 0.0
          %v1700 = vand.u32 %v1641, 2147483648
          %v1701 = vsel %vm1699, %v1700, %v1698
          %v1702 = vrsqrt.pop %v1642
          %v1703 = vmul.f32 %v1642, %v1702
          %vm1704 = vcmp.eq.f32.partialorder %v1642, inf
          %v1705 = vsel %vm1704, %v1642, %v1703
          %vm1706 = vcmp.eq.f32.partialorder %v1642, 0.0
          %v1707 = vand.u32 %v1642, 2147483648
          %v1708 = vsel %vm1706, %v1707, %v1705
          %v1709 = vrsqrt.pop %v1643
          %v1710 = vmul.f32 %v1643, %v1709
          %vm1711 = vcmp.eq.f32.partialorder %v1643, inf
          %v1712 = vsel %vm1711, %v1643, %v1710
          %vm1713 = vcmp.eq.f32.partialorder %v1643, 0.0
          %v1714 = vand.u32 %v1643, 2147483648
          %v1715 = vsel %vm1713, %v1714, %v1712
          %v1716 = vrsqrt.pop %v1644
          %v1717 = vmul.f32 %v1644, %v1716
          %vm1718 = vcmp.eq.f32.partialorder %v1644, inf
          %v1719 = vsel %vm1718, %v1644, %v1717
          %vm1720 = vcmp.eq.f32.partialorder %v1644, 0.0
          %v1721 = vand.u32 %v1644, 2147483648
          %v1722 = vsel %vm1720, %v1721, %v1719
          %v1723 = vrsqrt.pop %v1645
          %v1724 = vmul.f32 %v1645, %v1723
          %vm1725 = vcmp.eq.f32.partialorder %v1645, inf
          %v1726 = vsel %vm1725, %v1645, %v1724
          %vm1727 = vcmp.eq.f32.partialorder %v1645, 0.0
          %v1728 = vand.u32 %v1645, 2147483648
          %v1729 = vsel %vm1727, %v1728, %v1726
          %1730 = vst [vmem:[%s287] sm:$0xff] %v1652
          %1731 = vst [vmem:[%s287 + $0x8] sm:$0xff] %v1659
          %1732 = vst [vmem:[%s287 + $0x10] sm:$0xff] %v1666
          %1733 = vst [vmem:[%s287 + $0x18] sm:$0xff] %v1673
          %1734 = vst [vmem:[%s287 + $0x20] sm:$0xff] %v1680
          %1735 = vst [vmem:[%s287 + $0x28] sm:$0xff] %v1687
          %1736 = vst [vmem:[%s287 + $0x30] sm:$0xff] %v1694
          %1737 = vst [vmem:[%s287 + $0x38] sm:$0xff] %v1701
          %1738 = vst [vmem:[%s287 + $0x40] sm:$0xf] %v1708
          %1739 = vst [vmem:[%s287 + $0x48] sm:$0xf] %v1715
          %1740 = vst [vmem:[%s287 + $0x50] sm:$0xf] %v1722
          %1741 = vst [vmem:[%s287 + $0x58] sm:$0xf] %v1729
        $region52: #{tpu_custom_call.1} parent=31 // pred_fallthru
          _
        %s1742 = sand.u32 %s125, 1
        %s1743 = scalar_lea.sflag [#allocation6], %s1742
        %s1744 = sand.u32 %s125, 1
        %s1745 = smul.addr %s1744, 96
        %s1746 = scalar_lea.vmem [#allocation10], %s1745
        // Predicated region
        $region53: #{tpu_custom_call.1} parent=31 // pred_check
          %p1747 = pneg %p135
        $region54: #{tpu_custom_call.1} parent=31 // pred_check_branch
          %1749 = sbr.rel (%p1747) target = $region56
        $region55: #{tpu_custom_call.1} parent=31 // pred_region
          %s1750 = smul.u32 4, %s27
          %s1752 = ssub.s32 1536, 1536
          %1753 = vsyncadd %s1743, %s1752
          %s1754 = smul.addr %s1750, 128
          %s1755 = scalar_lea.hbm %s3, %s1754
          %s1756 = sshll.u32 %s1746, 4
          %s1757 = int_to_ptr.vmem [resolvable:$true] %s1756
          %1762 = dma.vmem_to_hbm [thread:$0]  %s1757, 1536, %s1755, %s1743, 512, 1024, 32
        $region56: #{tpu_custom_call.1} parent=31 // pred_fallthru
          _
      $region32: #{tpu_custom_call.1} parent=5 // pred_fallthru
        _
      %p1763 = scmp.le.s32.totalorder 2, %s18
      // Predicated region
      $region57: #{tpu_custom_call.1} parent=5 // pred_check
        %p1764 = pneg %p1763
      $region58: #{tpu_custom_call.1} parent=5 // pred_check_branch
        %1766 = sbr.rel (%p1764) target = $region60
      $region59: #{tpu_custom_call.1} parent=5 // pred_region
        %s1767 = ssub.s32 %s18, 2
        // Predicated region
        $region61: #{tpu_custom_call.1} parent=59 // pred_check
          %p1768 = pneg %p141
        $region62: #{tpu_custom_call.1} parent=59 // pred_check_branch
          %1770 = sbr.rel (%p1768) target = $region64
        $region63: #{tpu_custom_call.1} parent=59 // pred_region
          %s1771 = sand.u32 %s126, 1
          %s1772 = scalar_lea.sflag [#allocation6], %s1771
          %s1773 = sand.u32 %s126, 1
          %s1774 = smul.addr %s1773, 96
          %s1775 = scalar_lea.vmem [#allocation10], %s1774
          %1776 = dma.done %s1772, 1536
        $region64: #{tpu_custom_call.1} parent=59 // pred_fallthru
          _
      $region60: #{tpu_custom_call.1} parent=5 // pred_fallthru
        _
    $region6: #{tpu_custom_call.1} parent=1 // loop_footer
      %s22 = sadd.s32 1, %s18
    $region7: #{tpu_custom_call.1} parent=1 // loop_footer_branch
      %17 = sbr.rel target = $region3
    $region8: #{tpu_custom_call.1} parent=1 // loop_exit
      _
    %1777 = vsyncpa [#allocation5], 1
    %s1778 = scalar_lea.sflag [#allocation5], 1
    %1779 = vsyncpa %s1778, 1
    %1780 = vsyncpa [#allocation8], 1
    %s1781 = scalar_lea.sflag [#allocation8], 1
    %1782 = vsyncpa %s1781, 1
    %1783 = vsyncpa [#allocation6], 1
    %s1784 = scalar_lea.sflag [#allocation6], 1
    %1785 = vsyncpa %s1784, 1

</llo_original>
